<compile_context>
chip_gen: v6e
topology: v6e:2x2x1
jax: 0.10.0
libtpu: 0.0.40
codegen_flags: <defaults>
</compile_context>

<pallas_src>
import math
import functools

import jax
import jax.numpy as jnp
from jax import lax
from jax.experimental import pallas as pl
from jax.experimental.pallas import tpu as pltpu


def _mhca_kernel(num_heads, head_dim, scale,
                 q_ref, k_ref, v_ref,
                 wq_ref, bq_ref, wk_ref, bk_ref, wv_ref, bv_ref,
                 wo_ref, bo_ref,
                 o_ref,
                 kp_ref, vp_ref, ctx_ref):
    """One grid step = one (batch element, query tile).

    q_ref:  (1, TQ, H)             k_ref / v_ref: (1, Sk, H)
    wq/wk/wv/wo_ref: (H, H) pre-transposed (y = x @ W)      b*_ref: (1, H)
    o_ref:  (1, TQ, H)
    kp_ref / vp_ref: (Sk, H) VMEM scratch — projected K/V cached across query tiles
    ctx_ref: (TQ, H) VMEM scratch — lane-concatenated per-head context
    """
    qi = pl.program_id(1)
    cdt = q_ref.dtype  # matmul operand dtype (bf16 in prod, f32 in the demo)

    # ---- K/V projection: once per batch element, reused for every query tile.
    # Full MXU-wide (Sk,H)@(H,H) matmuls; results cached in VMEM scratch.
    @pl.when(qi == 0)
    def _project_kv():
        k_in = k_ref[0]                                   # (Sk, H)
        v_in = v_ref[0]
        kp = (jnp.dot(k_in, wk_ref[...], preferred_element_type=jnp.float32)
              + bk_ref[...].astype(jnp.float32))
        vp = (jnp.dot(v_in, wv_ref[...], preferred_element_type=jnp.float32)
              + bv_ref[...].astype(jnp.float32))
        kp_ref[...] = kp.astype(cdt)
        vp_ref[...] = vp.astype(cdt)

    # ---- Q projection for this tile: one MXU-wide (TQ,H)@(H,H) matmul,
    # with 1/sqrt(head_dim) folded into Q.
    q_in = q_ref[0]                                        # (TQ, H)
    qp = ((jnp.dot(q_in, wq_ref[...], preferred_element_type=jnp.float32)
           + bq_ref[...].astype(jnp.float32)) * scale).astype(cdt)

    kp = kp_ref[...]                                       # (Sk, H)
    vp = vp_ref[...]

    # ---- Per-head attention.  Static loop: per-head temps are only (TQ, Sk)
    # and (TQ, hd).  For very large num_heads convert to lax.fori_loop to bound
    # live ranges (matters under v7x's 64 MiB VMEM).
    for h in range(num_heads):
        lo = h * head_dim
        hi = lo + head_dim
        qh = qp[:, lo:hi]                                  # (TQ, hd)
        kh = kp[:, lo:hi]                                  # (Sk, hd)
        vh = vp[:, lo:hi]                                  # (Sk, hd)

        # scores = qh @ kh^T — contract last axes directly on the MXU
        # (no transposed copy of K materialized).
        scores = lax.dot_general(
            qh, kh, dimension_numbers=(((1,), (1,)), ((), ())),
            preferred_element_type=jnp.float32)            # (TQ, Sk) f32

        # Numerically stable softmax with deferred normalization (f32 math).
        m = jnp.max(scores, axis=-1, keepdims=True)
        e = jnp.exp(scores - m)                            # unnormalized probs
        denom = jnp.sum(e, axis=-1, keepdims=True)         # (TQ, 1)
        # TODO(synk): attention-weight dropout omitted (inference mode).
        ctx = jnp.dot(e.astype(cdt), vh,
                      preferred_element_type=jnp.float32)  # (TQ, hd)
        ctx = ctx * pl.reciprocal(denom)                   # normalize (TQ,1) only

        # Lane-concatenate this head's context for one fused output matmul.
        ctx_ref[:, lo:hi] = ctx.astype(cdt)

    # ---- Fused output projection: full-K (TQ,H)@(H,H) matmul + bias.
    out = (jnp.dot(ctx_ref[...], wo_ref[...], preferred_element_type=jnp.float32)
           + bo_ref[...].astype(jnp.float32))
    o_ref[0] = out.astype(o_ref.dtype)


def _tpu_vmem_capacity_bytes():
    try:
        return int(pltpu.get_tpu_info().vmem_capacity_bytes)
    except Exception:
        return None


def _pick_q_tile(sq, max_tile):
    """Largest query tile <= max_tile dividing Sq, keeping (8,128) tiling happy."""
    for t in (512, 256, 128, 64, 32, 16, 8):
        if t <= max_tile and sq % t == 0:
            return t
    return sq  # ragged Sq: fall back to a single full-extent block


def prepare_mhca_params(params, dtype=jnp.float32):
    """One-time weight preprocessing (hoisted out of the per-call hot path).

    PyTorch nn.Linear stores W as (out, in) with y = x @ W.T + b; pre-transpose
    once so the kernel computes y = x @ W directly."""
    H = params["wq"].shape[0]
    return {
        "wq": jnp.asarray(params["wq"], dtype).T,
        "wk": jnp.asarray(params["wk"], dtype).T,
        "wv": jnp.asarray(params["wv"], dtype).T,
        "wo": jnp.asarray(params["wo"], dtype).T,
        "bq": jnp.asarray(params["bq"], dtype).reshape(1, H),
        "bk": jnp.asarray(params["bk"], dtype).reshape(1, H),
        "bv": jnp.asarray(params["bv"], dtype).reshape(1, H),
        "bo": jnp.asarray(params["bo"], dtype).reshape(1, H),
    }


def multi_head_cross_attention(query, key, value, prepped, num_heads):
    """Pallas forward mirroring MultiHeadCrossAttention.forward (eval mode)."""
    B, Sq, H = query.shape
    Sk = key.shape[1]
    assert H % num_heads == 0
    head_dim = H // num_heads
    dt = query.dtype

    # VMEM budget / max query tile by chip generation (v7x has only 64 MiB).
    cap = _tpu_vmem_capacity_bytes()
    if cap is not None and cap > 64 * 1024 * 1024:        # v5e / v6e (128 MiB)
        max_tq, vmem_limit = 512, 64 * 1024 * 1024
    else:                                                  # v7x or unknown: conservative
        max_tq, vmem_limit = 256, 48 * 1024 * 1024

    TQ = _pick_q_tile(Sq, max_tq)
    n_q_tiles = Sq // TQ

    kernel = functools.partial(
        _mhca_kernel, num_heads, head_dim, 1.0 / math.sqrt(head_dim))

    q_spec = pl.BlockSpec((1, TQ, H), lambda b, qi: (b, qi, 0))
    # Full-Sk K/V streamed per batch element; block index is constant in qi so
    # the copy only happens when the batch element changes.
    # TODO(synk): for very long Sk, tile Sk with an online-softmax inner loop
    # (flash-style) instead of caching full (Sk,H) K/V + (TQ,Sk) scores.
    kv_spec = pl.BlockSpec((1, Sk, H), lambda b, qi: (b, 0, 0))
    w_spec = pl.BlockSpec((H, H), lambda b, qi: (0, 0))
    b_spec = pl.BlockSpec((1, H), lambda b, qi: (0, 0))
    out_spec = pl.BlockSpec((1, TQ, H), lambda b, qi: (b, qi, 0))

    out = pl.pallas_call(
        kernel,
        out_shape=jax.ShapeDtypeStruct((B, Sq, H), dt),
        grid=(B, n_q_tiles),
        in_specs=[
            q_spec, kv_spec, kv_spec,
            w_spec, b_spec,    # Q projection
            w_spec, b_spec,    # K projection
            w_spec, b_spec,    # V projection
            w_spec, b_spec,    # output projection
        ],
        out_specs=out_spec,
        scratch_shapes=[
            pltpu.VMEM((Sk, H), dt),   # projected K cache
            pltpu.VMEM((Sk, H), dt),   # projected V cache
            pltpu.VMEM((TQ, H), dt),   # lane-concatenated per-head context
        ],
        compiler_params=pltpu.CompilerParams(
            # batch stays "parallel" (v7x dual-TC friendly); qi must be
            # "arbitrary" because the projected-K/V scratch is carried across
            # query tiles of the same batch element.
            dimension_semantics=("parallel", "arbitrary"),
            vmem_limit_bytes=vmem_limit),
    )(query, key, value,
      prepped["wq"], prepped["bq"], prepped["wk"], prepped["bk"],
      prepped["wv"], prepped["bv"], prepped["wo"], prepped["bo"])

    # Mirror `output.squeeze(1) if output.size(1) == 1 else output`.
    if out.shape[1] == 1:
        out = out.reshape(B, H)
    return out


def _reference(query, key, value, params, num_heads):
    """Pure-JAX reference mirroring the PyTorch forward (eval mode)."""
    B, Sq, H = query.shape
    hd = H // num_heads

    def lin(x, w, b):
        return x @ w.T + b

    Q = lin(query, params["wq"], params["bq"])
    K = lin(key, params["wk"], params["bk"])
    V = lin(value, params["wv"], params["bv"])

    def split(x):
        return x.reshape(B, -1, num_heads, hd).transpose(0, 2, 1, 3)

    Qh, Kh, Vh = split(Q), split(K), split(V)
    scores = jnp.einsum("bhqd,bhkd->bhqk", Qh, Kh) / math.sqrt(hd)
    attn = jax.nn.softmax(scores, axis=-1)
    ctx = jnp.einsum("bhqk,bhkd->bhqd", attn, Vh)
    ctx = ctx.transpose(0, 2, 1, 3).reshape(B, -1, H)
    out = lin(ctx, params["wo"], params["bo"])
    if out.shape[1] == 1:
        out = out.reshape(B, H)
    return out


if __name__ == "__main__":
    # Small deterministic config: batch=2, seq=8, hidden=32, heads=4.
    B, Sq, Sk, H, NUM_HEADS = 2, 8, 8, 32, 4

    key0 = jax.random.PRNGKey(0)
    keys = jax.random.split(key0, 11)

    scale = 1.0 / math.sqrt(H)
    params = {
        "wq": jax.random.uniform(keys[0], (H, H), jnp.float32, -scale, scale),
        "bq": jax.random.uniform(keys[1], (H,), jnp.float32, -scale, scale),
        "wk": jax.random.uniform(keys[2], (H, H), jnp.float32, -scale, scale),
        "bk": jax.random.uniform(keys[3], (H,), jnp.float32, -scale, scale),
        "wv": jax.random.uniform(keys[4], (H, H), jnp.float32, -scale, scale),
        "bv": jax.random.uniform(keys[5], (H,), jnp.float32, -scale, scale),
        "wo": jax.random.uniform(keys[6], (H, H), jnp.float32, -scale, scale),
        "bo": jax.random.uniform(keys[7], (H,), jnp.float32, -scale, scale),
    }

    query = jax.random.normal(keys[8], (B, Sq, H), jnp.float32)
    key_t = jax.random.normal(keys[9], (B, Sk, H), jnp.float32)
    value = jax.random.normal(keys[10], (B, Sk, H), jnp.float32)

    prepped = prepare_mhca_params(params, query.dtype)          # one-time prep
    out = multi_head_cross_attention(query, key_t, value, prepped, NUM_HEADS)
    out = jax.block_until_ready(out)

    ref = _reference(query, key_t, value, params, NUM_HEADS)
    assert out.shape == ref.shape, (out.shape, ref.shape)
    assert jnp.allclose(out, ref, atol=2e-3, rtol=2e-3), float(
        jnp.max(jnp.abs(out - ref)))

    print("KERNEL_OK")
</pallas_src>

<mosaic_0001>
module attributes {stable_mosaic.version = 11 : i64} {
  func.func @_mhca_kernel(%arg0: i32, %arg1: i32, %arg2: memref<1x8x32xf32, #tpu.memory_space<vmem>>, %arg3: memref<1x8x32xf32, #tpu.memory_space<vmem>>, %arg4: memref<1x8x32xf32, #tpu.memory_space<vmem>>, %arg5: memref<32x32xf32, #tpu.memory_space<vmem>>, %arg6: memref<1x32xf32, #tpu.memory_space<vmem>>, %arg7: memref<32x32xf32, #tpu.memory_space<vmem>>, %arg8: memref<1x32xf32, #tpu.memory_space<vmem>>, %arg9: memref<32x32xf32, #tpu.memory_space<vmem>>, %arg10: memref<1x32xf32, #tpu.memory_space<vmem>>, %arg11: memref<32x32xf32, #tpu.memory_space<vmem>>, %arg12: memref<1x32xf32, #tpu.memory_space<vmem>>, %arg13: memref<1x8x32xf32, #tpu.memory_space<vmem>>, %arg14: memref<8x32xf32, #tpu.memory_space<vmem>>, %arg15: memref<8x32xf32, #tpu.memory_space<vmem>>, %arg16: memref<8x32xf32, #tpu.memory_space<vmem>>) attributes {dimension_semantics = [#tpu.dimension_semantics<parallel>, #tpu.dimension_semantics<arbitrary>], iteration_bounds = array<i64: 2, 1>, scalar_prefetch = 0 : i64, scratch_operands = 3 : i64, tpu.core_type = #tpu.core_type<tc>, window_params = [{transform_indices = @transform_0, window_bounds = array<i64: 1, 8, 32>}, {transform_indices = @transform_1, window_bounds = array<i64: 1, 8, 32>}, {transform_indices = @transform_2, window_bounds = array<i64: 1, 8, 32>}, {pipeline_mode = #tpu.pipeline_mode<synchronous>, transform_indices = @transform_3, window_bounds = array<i64: 32, 32>}, {pipeline_mode = #tpu.pipeline_mode<synchronous>, transform_indices = @transform_4, window_bounds = array<i64: 1, 32>}, {pipeline_mode = #tpu.pipeline_mode<synchronous>, transform_indices = @transform_5, window_bounds = array<i64: 32, 32>}, {pipeline_mode = #tpu.pipeline_mode<synchronous>, transform_indices = @transform_6, window_bounds = array<i64: 1, 32>}, {pipeline_mode = #tpu.pipeline_mode<synchronous>, transform_indices = @transform_7, window_bounds = array<i64: 32, 32>}, {pipeline_mode = #tpu.pipeline_mode<synchronous>, transform_indices = @transform_8, window_bounds = array<i64: 1, 32>}, {pipeline_mode = #tpu.pipeline_mode<synchronous>, transform_indices = @transform_9, window_bounds = array<i64: 32, 32>}, {pipeline_mode = #tpu.pipeline_mode<synchronous>, transform_indices = @transform_10, window_bounds = array<i64: 1, 32>}, {transform_indices = @transform_11, window_bounds = array<i64: 1, 8, 32>}]} {
    %c0_i32 = arith.constant 0 : i32
    %0 = arith.cmpi eq, %arg1, %c0_i32 : i32
    %1 = arith.extui %0 : i1 to i32
    %c0_i32_0 = arith.constant 0 : i32
    %2 = arith.cmpi ne, %1, %c0_i32_0 : i32
    scf.if %2 {
      %c0_43 = arith.constant 0 : index
      %c0_44 = arith.constant 0 : index
      %c0_45 = arith.constant 0 : index
      %87 = vector.load %arg3[%c0_43, %c0_44, %c0_45] : memref<1x8x32xf32, #tpu.memory_space<vmem>>, vector<1x8x32xf32>
      %88 = vector.shape_cast %87 : vector<1x8x32xf32> to vector<8x32xf32>
      %c0_46 = arith.constant 0 : index
      %c0_47 = arith.constant 0 : index
      %c0_48 = arith.constant 0 : index
      %89 = vector.load %arg4[%c0_46, %c0_47, %c0_48] : memref<1x8x32xf32, #tpu.memory_space<vmem>>, vector<1x8x32xf32>
      %90 = vector.shape_cast %89 : vector<1x8x32xf32> to vector<8x32xf32>
      %c0_49 = arith.constant 0 : index
      %c0_50 = arith.constant 0 : index
      %91 = vector.load %arg7[%c0_49, %c0_50] : memref<32x32xf32, #tpu.memory_space<vmem>>, vector<32x32xf32>
      %cst_51 = arith.constant dense<0.000000e+00> : vector<8x32xf32>
      %92 = tpu.matmul %88, %91, %cst_51 {dimension_numbers = #tpu.dot_dimension_numbers<[1], [0], [0], [1], [0, 0, 1, 1], [], []>} : vector<8x32xf32>, vector<32x32xf32>, vector<8x32xf32> -> vector<8x32xf32>
      %c0_52 = arith.constant 0 : index
      %c0_53 = arith.constant 0 : index
      %93 = vector.load %arg8[%c0_52, %c0_53] : memref<1x32xf32, #tpu.memory_space<vmem>>, vector<1x32xf32>
      %94 = vector.broadcast %93 : vector<1x32xf32> to vector<8x32xf32>
      %95 = arith.addf %92, %94 : vector<8x32xf32>
      %c0_54 = arith.constant 0 : index
      %c0_55 = arith.constant 0 : index
      %96 = vector.load %arg9[%c0_54, %c0_55] : memref<32x32xf32, #tpu.memory_space<vmem>>, vector<32x32xf32>
      %cst_56 = arith.constant dense<0.000000e+00> : vector<8x32xf32>
      %97 = tpu.matmul %90, %96, %cst_56 {dimension_numbers = #tpu.dot_dimension_numbers<[1], [0], [0], [1], [0, 0, 1, 1], [], []>} : vector<8x32xf32>, vector<32x32xf32>, vector<8x32xf32> -> vector<8x32xf32>
      %c0_57 = arith.constant 0 : index
      %c0_58 = arith.constant 0 : index
      %98 = vector.load %arg10[%c0_57, %c0_58] : memref<1x32xf32, #tpu.memory_space<vmem>>, vector<1x32xf32>
      %99 = vector.broadcast %98 : vector<1x32xf32> to vector<8x32xf32>
      %100 = arith.addf %97, %99 : vector<8x32xf32>
      %c0_59 = arith.constant 0 : index
      %c0_60 = arith.constant 0 : index
      %101 = vector.load %arg14[%c0_59, %c0_60] : memref<8x32xf32, #tpu.memory_space<vmem>>, vector<8x32xf32>
      tpu.vector_store %arg14[%c0_59, %c0_60], %95 {strides = array<i32>} : memref<8x32xf32, #tpu.memory_space<vmem>>, vector<8x32xf32>,
      %c0_61 = arith.constant 0 : index
      %c0_62 = arith.constant 0 : index
      %102 = vector.load %arg15[%c0_61, %c0_62] : memref<8x32xf32, #tpu.memory_space<vmem>>, vector<8x32xf32>
      tpu.vector_store %arg15[%c0_61, %c0_62], %100 {strides = array<i32>} : memref<8x32xf32, #tpu.memory_space<vmem>>, vector<8x32xf32>,
    } else {
    }
    %c0 = arith.constant 0 : index
    %c0_1 = arith.constant 0 : index
    %c0_2 = arith.constant 0 : index
    %3 = vector.load %arg2[%c0, %c0_1, %c0_2] : memref<1x8x32xf32, #tpu.memory_space<vmem>>, vector<1x8x32xf32>
    %4 = vector.shape_cast %3 : vector<1x8x32xf32> to vector<8x32xf32>
    %c0_3 = arith.constant 0 : index
    %c0_4 = arith.constant 0 : index
    %5 = vector.load %arg5[%c0_3, %c0_4] : memref<32x32xf32, #tpu.memory_space<vmem>>, vector<32x32xf32>
    %cst = arith.constant dense<0.000000e+00> : vector<8x32xf32>
    %6 = tpu.matmul %4, %5, %cst {dimension_numbers = #tpu.dot_dimension_numbers<[1], [0], [0], [1], [0, 0, 1, 1], [], []>} : vector<8x32xf32>, vector<32x32xf32>, vector<8x32xf32> -> vector<8x32xf32>
    %c0_5 = arith.constant 0 : index
    %c0_6 = arith.constant 0 : index
    %7 = vector.load %arg6[%c0_5, %c0_6] : memref<1x32xf32, #tpu.memory_space<vmem>>, vector<1x32xf32>
    %8 = vector.broadcast %7 : vector<1x32xf32> to vector<8x32xf32>
    %9 = arith.addf %6, %8 : vector<8x32xf32>
    %cst_7 = arith.constant 0.353553385 : f32
    %10 = vector.broadcast %cst_7 : f32 to vector<8x32xf32>
    %11 = arith.mulf %9, %10 : vector<8x32xf32>
    %c0_8 = arith.constant 0 : index
    %c0_9 = arith.constant 0 : index
    %12 = vector.load %arg14[%c0_8, %c0_9] : memref<8x32xf32, #tpu.memory_space<vmem>>, vector<8x32xf32>
    %c0_10 = arith.constant 0 : index
    %c0_11 = arith.constant 0 : index
    %13 = vector.load %arg15[%c0_10, %c0_11] : memref<8x32xf32, #tpu.memory_space<vmem>>, vector<8x32xf32>
    %14 = vector.extract_strided_slice %11 {offsets = [0, 0], sizes = [8, 8], strides = [1, 1]} : vector<8x32xf32> to vector<8x8xf32>
    %15 = vector.extract_strided_slice %12 {offsets = [0, 0], sizes = [8, 8], strides = [1, 1]} : vector<8x32xf32> to vector<8x8xf32>
    %16 = vector.extract_strided_slice %13 {offsets = [0, 0], sizes = [8, 8], strides = [1, 1]} : vector<8x32xf32> to vector<8x8xf32>
    %cst_12 = arith.constant dense<0.000000e+00> : vector<8x8xf32>
    %17 = tpu.matmul %14, %15, %cst_12 {dimension_numbers = #tpu.dot_dimension_numbers<[1], [1], [0], [0], [0, 0, 1, 0], [], []>} : vector<8x8xf32>, vector<8x8xf32>, vector<8x8xf32> -> vector<8x8xf32>
    %cst_13 = arith.constant dense<0xFF800000> : vector<8xf32>
    %18 = vector.multi_reduction <maximumf>, %17, %cst_13 [1] : vector<8x8xf32> to vector<8xf32>
    %19 = vector.shape_cast %18 : vector<8xf32> to vector<8x1xf32>
    %20 = vector.broadcast %19 : vector<8x1xf32> to vector<8x8xf32>
    %21 = arith.subf %17, %20 : vector<8x8xf32>
    %22 = math.exp %21 : vector<8x8xf32>
    %cst_14 = arith.constant dense<0.000000e+00> : vector<8xf32>
    %23 = vector.multi_reduction <add>, %22, %cst_14 [1] : vector<8x8xf32> to vector<8xf32>
    %24 = vector.shape_cast %23 : vector<8xf32> to vector<8x1xf32>
    %cst_15 = arith.constant dense<0.000000e+00> : vector<8x8xf32>
    %25 = tpu.matmul %22, %16, %cst_15 {dimension_numbers = #tpu.dot_dimension_numbers<[1], [0], [0], [1], [0, 0, 1, 1], [], []>} : vector<8x8xf32>, vector<8x8xf32>, vector<8x8xf32> -> vector<8x8xf32>
    %26 = tpu.reciprocal %24 : vector<8x1xf32> -> vector<8x1xf32>
    %27 = vector.broadcast %26 : vector<8x1xf32> to vector<8x8xf32>
    %28 = arith.mulf %25, %27 : vector<8x8xf32>
    %c0_16 = arith.constant 0 : index
    %c0_17 = arith.constant 0 : index
    %29 = vector.load %arg16[%c0_16, %c0_17] : memref<8x32xf32, #tpu.memory_space<vmem>>, vector<8x8xf32>
    tpu.vector_store %arg16[%c0_16, %c0_17], %28 {strides = array<i32>} : memref<8x32xf32, #tpu.memory_space<vmem>>, vector<8x8xf32>,
    %30 = vector.extract_strided_slice %11 {offsets = [0, 8], sizes = [8, 8], strides = [1, 1]} : vector<8x32xf32> to vector<8x8xf32>
    %31 = vector.extract_strided_slice %12 {offsets = [0, 8], sizes = [8, 8], strides = [1, 1]} : vector<8x32xf32> to vector<8x8xf32>
    %32 = vector.extract_strided_slice %13 {offsets = [0, 8], sizes = [8, 8], strides = [1, 1]} : vector<8x32xf32> to vector<8x8xf32>
    %cst_18 = arith.constant dense<0.000000e+00> : vector<8x8xf32>
    %33 = tpu.matmul %30, %31, %cst_18 {dimension_numbers = #tpu.dot_dimension_numbers<[1], [1], [0], [0], [0, 0, 1, 0], [], []>} : vector<8x8xf32>, vector<8x8xf32>, vector<8x8xf32> -> vector<8x8xf32>
    %cst_19 = arith.constant dense<0xFF800000> : vector<8xf32>
    %34 = vector.multi_reduction <maximumf>, %33, %cst_19 [1] : vector<8x8xf32> to vector<8xf32>
    %35 = vector.shape_cast %34 : vector<8xf32> to vector<8x1xf32>
    %36 = vector.broadcast %35 : vector<8x1xf32> to vector<8x8xf32>
    %37 = arith.subf %33, %36 : vector<8x8xf32>
    %38 = math.exp %37 : vector<8x8xf32>
    %cst_20 = arith.constant dense<0.000000e+00> : vector<8xf32>
    %39 = vector.multi_reduction <add>, %38, %cst_20 [1] : vector<8x8xf32> to vector<8xf32>
    %40 = vector.shape_cast %39 : vector<8xf32> to vector<8x1xf32>
    %cst_21 = arith.constant dense<0.000000e+00> : vector<8x8xf32>
    %41 = tpu.matmul %38, %32, %cst_21 {dimension_numbers = #tpu.dot_dimension_numbers<[1], [0], [0], [1], [0, 0, 1, 1], [], []>} : vector<8x8xf32>, vector<8x8xf32>, vector<8x8xf32> -> vector<8x8xf32>
    %42 = tpu.reciprocal %40 : vector<8x1xf32> -> vector<8x1xf32>
    %43 = vector.broadcast %42 : vector<8x1xf32> to vector<8x8xf32>
    %44 = arith.mulf %41, %43 : vector<8x8xf32>
    %c0_22 = arith.constant 0 : index
    %c8 = arith.constant 8 : index
    %45 = vector.load %arg16[%c0_22, %c8] : memref<8x32xf32, #tpu.memory_space<vmem>>, vector<8x8xf32>
    tpu.vector_store %arg16[%c0_22, %c8], %44 {strides = array<i32>} : memref<8x32xf32, #tpu.memory_space<vmem>>, vector<8x8xf32>,
    %46 = vector.extract_strided_slice %11 {offsets = [0, 16], sizes = [8, 8], strides = [1, 1]} : vector<8x32xf32> to vector<8x8xf32>
    %47 = vector.extract_strided_slice %12 {offsets = [0, 16], sizes = [8, 8], strides = [1, 1]} : vector<8x32xf32> to vector<8x8xf32>
    %48 = vector.extract_strided_slice %13 {offsets = [0, 16], sizes = [8, 8], strides = [1, 1]} : vector<8x32xf32> to vector<8x8xf32>
    %cst_23 = arith.constant dense<0.000000e+00> : vector<8x8xf32>
    %49 = tpu.matmul %46, %47, %cst_23 {dimension_numbers = #tpu.dot_dimension_numbers<[1], [1], [0], [0], [0, 0, 1, 0], [], []>} : vector<8x8xf32>, vector<8x8xf32>, vector<8x8xf32> -> vector<8x8xf32>
    %cst_24 = arith.constant dense<0xFF800000> : vector<8xf32>
    %50 = vector.multi_reduction <maximumf>, %49, %cst_24 [1] : vector<8x8xf32> to vector<8xf32>
    %51 = vector.shape_cast %50 : vector<8xf32> to vector<8x1xf32>
    %52 = vector.broadcast %51 : vector<8x1xf32> to vector<8x8xf32>
    %53 = arith.subf %49, %52 : vector<8x8xf32>
    %54 = math.exp %53 : vector<8x8xf32>
    %cst_25 = arith.constant dense<0.000000e+00> : vector<8xf32>
    %55 = vector.multi_reduction <add>, %54, %cst_25 [1] : vector<8x8xf32> to vector<8xf32>
    %56 = vector.shape_cast %55 : vector<8xf32> to vector<8x1xf32>
    %cst_26 = arith.constant dense<0.000000e+00> : vector<8x8xf32>
    %57 = tpu.matmul %54, %48, %cst_26 {dimension_numbers = #tpu.dot_dimension_numbers<[1], [0], [0], [1], [0, 0, 1, 1], [], []>} : vector<8x8xf32>, vector<8x8xf32>, vector<8x8xf32> -> vector<8x8xf32>
    %58 = tpu.reciprocal %56 : vector<8x1xf32> -> vector<8x1xf32>
    %59 = vector.broadcast %58 : vector<8x1xf32> to vector<8x8xf32>
    %60 = arith.mulf %57, %59 : vector<8x8xf32>
    %c0_27 = arith.constant 0 : index
    %c16 = arith.constant 16 : index
    %61 = vector.load %arg16[%c0_27, %c16] : memref<8x32xf32, #tpu.memory_space<vmem>>, vector<8x8xf32>
    tpu.vector_store %arg16[%c0_27, %c16], %60 {strides = array<i32>} : memref<8x32xf32, #tpu.memory_space<vmem>>, vector<8x8xf32>,
    %62 = vector.extract_strided_slice %11 {offsets = [0, 24], sizes = [8, 8], strides = [1, 1]} : vector<8x32xf32> to vector<8x8xf32>
    %63 = vector.extract_strided_slice %12 {offsets = [0, 24], sizes = [8, 8], strides = [1, 1]} : vector<8x32xf32> to vector<8x8xf32>
    %64 = vector.extract_strided_slice %13 {offsets = [0, 24], sizes = [8, 8], strides = [1, 1]} : vector<8x32xf32> to vector<8x8xf32>
    %cst_28 = arith.constant dense<0.000000e+00> : vector<8x8xf32>
    %65 = tpu.matmul %62, %63, %cst_28 {dimension_numbers = #tpu.dot_dimension_numbers<[1], [1], [0], [0], [0, 0, 1, 0], [], []>} : vector<8x8xf32>, vector<8x8xf32>, vector<8x8xf32> -> vector<8x8xf32>
    %cst_29 = arith.constant dense<0xFF800000> : vector<8xf32>
    %66 = vector.multi_reduction <maximumf>, %65, %cst_29 [1] : vector<8x8xf32> to vector<8xf32>
    %67 = vector.shape_cast %66 : vector<8xf32> to vector<8x1xf32>
    %68 = vector.broadcast %67 : vector<8x1xf32> to vector<8x8xf32>
    %69 = arith.subf %65, %68 : vector<8x8xf32>
    %70 = math.exp %69 : vector<8x8xf32>
    %cst_30 = arith.constant dense<0.000000e+00> : vector<8xf32>
    %71 = vector.multi_reduction <add>, %70, %cst_30 [1] : vector<8x8xf32> to vector<8xf32>
    %72 = vector.shape_cast %71 : vector<8xf32> to vector<8x1xf32>
    %cst_31 = arith.constant dense<0.000000e+00> : vector<8x8xf32>
    %73 = tpu.matmul %70, %64, %cst_31 {dimension_numbers = #tpu.dot_dimension_numbers<[1], [0], [0], [1], [0, 0, 1, 1], [], []>} : vector<8x8xf32>, vector<8x8xf32>, vector<8x8xf32> -> vector<8x8xf32>
    %74 = tpu.reciprocal %72 : vector<8x1xf32> -> vector<8x1xf32>
    %75 = vector.broadcast %74 : vector<8x1xf32> to vector<8x8xf32>
    %76 = arith.mulf %73, %75 : vector<8x8xf32>
    %c0_32 = arith.constant 0 : index
    %c24 = arith.constant 24 : index
    %77 = vector.load %arg16[%c0_32, %c24] : memref<8x32xf32, #tpu.memory_space<vmem>>, vector<8x8xf32>
    tpu.vector_store %arg16[%c0_32, %c24], %76 {strides = array<i32>} : memref<8x32xf32, #tpu.memory_space<vmem>>, vector<8x8xf32>,
    %c0_33 = arith.constant 0 : index
    %c0_34 = arith.constant 0 : index
    %78 = vector.load %arg16[%c0_33, %c0_34] : memref<8x32xf32, #tpu.memory_space<vmem>>, vector<8x32xf32>
    %c0_35 = arith.constant 0 : index
    %c0_36 = arith.constant 0 : index
    %79 = vector.load %arg11[%c0_35, %c0_36] : memref<32x32xf32, #tpu.memory_space<vmem>>, vector<32x32xf32>
    %cst_37 = arith.constant dense<0.000000e+00> : vector<8x32xf32>
    %80 = tpu.matmul %78, %79, %cst_37 {dimension_numbers = #tpu.dot_dimension_numbers<[1], [0], [0], [1], [0, 0, 1, 1], [], []>} : vector<8x32xf32>, vector<32x32xf32>, vector<8x32xf32> -> vector<8x32xf32>
    %c0_38 = arith.constant 0 : index
    %c0_39 = arith.constant 0 : index
    %81 = vector.load %arg12[%c0_38, %c0_39] : memref<1x32xf32, #tpu.memory_space<vmem>>, vector<1x32xf32>
    %82 = vector.broadcast %81 : vector<1x32xf32> to vector<8x32xf32>
    %83 = arith.addf %80, %82 : vector<8x32xf32>
    %c0_40 = arith.constant 0 : index
    %c0_41 = arith.constant 0 : index
    %c0_42 = arith.constant 0 : index
    %84 = vector.load %arg13[%c0_40, %c0_41, %c0_42] : memref<1x8x32xf32, #tpu.memory_space<vmem>>, vector<1x8x32xf32>
    %85 = vector.shape_cast %84 : vector<1x8x32xf32> to vector<8x32xf32>
    %86 = vector.shape_cast %83 : vector<8x32xf32> to vector<1x8x32xf32>
    tpu.vector_store %arg13[%c0_40, %c0_41, %c0_42], %86 {strides = array<i32>} : memref<1x8x32xf32, #tpu.memory_space<vmem>>, vector<1x8x32xf32>,
    return
  }
  func.func @transform_0(%arg0: i32, %arg1: i32) -> (i32, i32, i32) {
    %c0_i32 = arith.constant 0 : i32
    %c0_i32_0 = arith.constant 0 : i32
    return %arg0, %arg1, %c0_i32 : i32, i32, i32
  }
  func.func @transform_1(%arg0: i32, %arg1: i32) -> (i32, i32, i32) {
    %c0_i32 = arith.constant 0 : i32
    %c0_i32_0 = arith.constant 0 : i32
    %c0_i32_1 = arith.constant 0 : i32
    return %arg0, %c0_i32, %c0_i32_0 : i32, i32, i32
  }
  func.func @transform_2(%arg0: i32, %arg1: i32) -> (i32, i32, i32) {
    %c0_i32 = arith.constant 0 : i32
    %c0_i32_0 = arith.constant 0 : i32
    %c0_i32_1 = arith.constant 0 : i32
    return %arg0, %c0_i32, %c0_i32_0 : i32, i32, i32
  }
  func.func @transform_3(%arg0: i32, %arg1: i32) -> (i32, i32) {
    %c0_i32 = arith.constant 0 : i32
    %c0_i32_0 = arith.constant 0 : i32
    %c0_i32_1 = arith.constant 0 : i32
    return %c0_i32, %c0_i32_0 : i32, i32
  }
  func.func @transform_4(%arg0: i32, %arg1: i32) -> (i32, i32) {
    %c0_i32 = arith.constant 0 : i32
    %c0_i32_0 = arith.constant 0 : i32
    %c0_i32_1 = arith.constant 0 : i32
    return %c0_i32, %c0_i32_0 : i32, i32
  }
  func.func @transform_5(%arg0: i32, %arg1: i32) -> (i32, i32) {
    %c0_i32 = arith.constant 0 : i32
    %c0_i32_0 = arith.constant 0 : i32
    %c0_i32_1 = arith.constant 0 : i32
    return %c0_i32, %c0_i32_0 : i32, i32
  }
  func.func @transform_6(%arg0: i32, %arg1: i32) -> (i32, i32) {
    %c0_i32 = arith.constant 0 : i32
    %c0_i32_0 = arith.constant 0 : i32
    %c0_i32_1 = arith.constant 0 : i32
    return %c0_i32, %c0_i32_0 : i32, i32
  }
  func.func @transform_7(%arg0: i32, %arg1: i32) -> (i32, i32) {
    %c0_i32 = arith.constant 0 : i32
    %c0_i32_0 = arith.constant 0 : i32
    %c0_i32_1 = arith.constant 0 : i32
    return %c0_i32, %c0_i32_0 : i32, i32
  }
  func.func @transform_8(%arg0: i32, %arg1: i32) -> (i32, i32) {
    %c0_i32 = arith.constant 0 : i32
    %c0_i32_0 = arith.constant 0 : i32
    %c0_i32_1 = arith.constant 0 : i32
    return %c0_i32, %c0_i32_0 : i32, i32
  }
  func.func @transform_9(%arg0: i32, %arg1: i32) -> (i32, i32) {
    %c0_i32 = arith.constant 0 : i32
    %c0_i32_0 = arith.constant 0 : i32
    %c0_i32_1 = arith.constant 0 : i32
    return %c0_i32, %c0_i32_0 : i32, i32
  }
  func.func @transform_10(%arg0: i32, %arg1: i32) -> (i32, i32) {
    %c0_i32 = arith.constant 0 : i32
    %c0_i32_0 = arith.constant 0 : i32
    %c0_i32_1 = arith.constant 0 : i32
    return %c0_i32, %c0_i32_0 : i32, i32
  }
  func.func @transform_11(%arg0: i32, %arg1: i32) -> (i32, i32, i32) {
    %c0_i32 = arith.constant 0 : i32
    %c0_i32_0 = arith.constant 0 : i32
    return %arg0, %arg1, %c0_i32 : i32, i32, i32
  }
}

</mosaic_0001>

<llo_original>
// kernel: tpu_custom_call.1
$region0: #{tpu_custom_call.1}
  #allocation0 [shape = 'u32[]', space=smem, size = 0x4, offset = 0x4, fixed_abs, tag = 'smem constant byte address 0x4 - core index']
  #allocation1 [shape = 'u32[144,128]{1,0:T(1,128)}', space=vmem, size = 0x12000, scoped, tag = 'internal scratch']
  #allocation2 [shape = 'f32[8,32]{1,0:T(8,128)}', space=vmem, size = 0x1000, scoped, tag = 'scratch operand']
  #allocation3 [shape = 'f32[8,32]{1,0:T(8,128)}', space=vmem, size = 0x1000, scoped, tag = 'scratch operand']
  #allocation4 [shape = 'f32[8,32]{1,0:T(8,128)}', space=vmem, size = 0x1000, scoped, tag = 'scratch operand']
  %s0 = inlined_call_operand.hbm [shape: f32[2,8,32], index: 0, kind: input, shape index: {}]
  %s1 = inlined_call_operand.hbm [shape: f32[2,8,32], index: 1, kind: input, shape index: {}]
  %s2 = inlined_call_operand.hbm [shape: f32[2,8,32], index: 2, kind: input, shape index: {}]
  %s3 = inlined_call_operand.hbm [shape: f32[32,32], index: 3, kind: input, shape index: {}]
  %s4 = inlined_call_operand.vmem [shape: f32[1,32], index: 4, kind: input, shape index: {}]
  %s5 = inlined_call_operand.hbm [shape: f32[32,32], index: 5, kind: input, shape index: {}]
  %s6 = inlined_call_operand.vmem [shape: f32[1,32], index: 6, kind: input, shape index: {}]
  %s7 = inlined_call_operand.hbm [shape: f32[32,32], index: 7, kind: input, shape index: {}]
  %s8 = inlined_call_operand.vmem [shape: f32[1,32], index: 8, kind: input, shape index: {}]
  %s9 = inlined_call_operand.hbm [shape: f32[32,32], index: 9, kind: input, shape index: {}]
  %s10 = inlined_call_operand.vmem [shape: f32[1,32], index: 10, kind: input, shape index: {}]
  %s11 = inlined_call_operand.hbm [shape: f32[2,8,32], index: 11, kind: output, shape index: {}]
  %s12 = sld [smem:[#allocation0]]
  $region109: #{tpu_custom_call.1} parent=0
    _
  %s14 = ssub.s32 1, %s12
  %s15 = scalar_select 0, %s14, %s12
  $region1: #{tpu_custom_call.1} parent=0
    #allocation5 [shape = 'u8[8192]{0}', space=vmem, size = 0x2000, scoped, tag = 'input window, operand 0']
    #allocation6 [shape = 's32[2]{0}', space=sflag, size = 0x8, scoped, tag = 'scoped memory for tpu_custom_call.1']
    #allocation7 [shape = 's32[2]{0}', space=sflag, size = 0x8, scoped, tag = 'scoped memory for tpu_custom_call.1']
    #allocation8 [shape = 'u8[8192]{0}', space=vmem, size = 0x2000, scoped, tag = 'input window, operand 1']
    #allocation9 [shape = 's32[2]{0}', space=sflag, size = 0x8, scoped, tag = 'scoped memory for tpu_custom_call.1']
    #allocation10 [shape = 'u8[8192]{0}', space=vmem, size = 0x2000, scoped, tag = 'input window, operand 2']
    #allocation11 [shape = 'u8[16384]{0}', space=vmem, size = 0x4000, scoped, tag = 'input window, operand 3, single buffered']
    #allocation12 [shape = 's32[1]{0}', space=sflag, size = 0x4, scoped, tag = 'scoped memory for tpu_custom_call.1']
    #allocation13 [shape = 'u8[16384]{0}', space=vmem, size = 0x4000, scoped, tag = 'input window, operand 5, single buffered']
    #allocation14 [shape = 'u8[16384]{0}', space=vmem, size = 0x4000, scoped, tag = 'input window, operand 7, single buffered']
    #allocation15 [shape = 's32[1]{0}', space=sflag, size = 0x4, scoped, tag = 'scoped memory for tpu_custom_call.1']
    #allocation16 [shape = 'u8[16384]{0}', space=vmem, size = 0x4000, scoped, tag = 'input window, operand 9, single buffered']
    #allocation17 [shape = 'u8[8192]{0}', space=vmem, size = 0x2000, scoped, tag = 'output window, operand 0']
    %16 = vsyncpa [#allocation6], 0
    %s17 = scalar_lea.sflag [#allocation6], 1
    %18 = vsyncpa %s17, 0
    %19 = vsyncpa [#allocation9], 0
    %s20 = scalar_lea.sflag [#allocation9], 1
    %21 = vsyncpa %s20, 0
    %22 = vsyncpa [#allocation12], 0
    %23 = vsyncpa [#allocation15], 0
    %24 = vsyncpa [#allocation7], 0
    %s25 = scalar_lea.sflag [#allocation7], 1
    %26 = vsyncpa %s25, 0
    loop: start=0, step=1, limit=4
    $region2: #{tpu_custom_call.1} parent=1 // loop_pre_header
      _
    $region3: #{tpu_custom_call.1} parent=1 // loop_header
      %s28 = sphi 0, %s32
      %p29 = scmp.ge.s32.totalorder %s28, 4
      %s35 = sphi 0, %s47
      %s36 = sphi 0, %s43
      %s37 = sphi 0, %s35
      %s38 = sphi 0, %s36
      %s39 = sphi 0, %s37
      %s40 = sphi 0, %s38
      %s52 = sphi 0, %s54
      %s55 = sphi 0, %s52
      %s56 = sphi 0, %s55
      %s72 = sphi 0, %s56
      %s78 = sphi 0, %s80
      %s81 = sphi 0, %s78
      %s82 = sphi 0, %s81
      %s98 = sphi 0, %s82
      %s104 = sphi 0, %s106
      %s107 = sphi 0, %s104
      %s108 = sphi 0, %s107
      %s124 = sphi 0, %s108
      %s128 = sphi 0, %s128
      %s130 = sphi 0, %s128
      %s131 = sphi 0, %s130
      %s145 = sphi 0, %s131
      %s149 = sphi 0, %s149
      %s151 = sphi 0, %s149
      %s152 = sphi 0, %s151
      %s166 = sphi 0, %s152
      %s170 = sphi 0, %s170
      %s172 = sphi 0, %s170
      %s173 = sphi 0, %s172
      %s187 = sphi 0, %s173
      %s191 = sphi 0, %s191
      %s193 = sphi 0, %s191
      %s194 = sphi 0, %s193
      %s208 = sphi 0, %s194
      %s212 = sphi 0, %s212
      %s214 = sphi 0, %s212
      %s215 = sphi 0, %s214
      %s229 = sphi 0, %s215
      %s233 = sphi 0, %s233
      %s235 = sphi 0, %s233
      %s236 = sphi 0, %s235
      %s250 = sphi 0, %s236
      %s254 = sphi 0, %s254
      %s256 = sphi 0, %s254
      %s257 = sphi 0, %s256
      %s271 = sphi 0, %s257
      %s275 = sphi 0, %s275
      %s277 = sphi 0, %s275
      %s278 = sphi 0, %s277
      %s292 = sphi 0, %s278
      %s300 = sphi 0, %s302
      %s303 = sphi 0, %s300
      %s304 = sphi 0, %s303
      %s320 = sphi 0, %s304
    $region4: #{tpu_custom_call.1} parent=1 // loop_header_branch
      %31 = sbr.rel (%p29) target = $region8
    $region5: #{tpu_custom_call.1} parent=1 // loop_body
      %s33 = ssub.s32 %s28, 1
      %s34 = ssub.s32 %s28, 2
      %s41 = sadd.s32 1, %s36
      %p42 = scmp.ge.s32.totalorder %s41, 1
      %s43 = scalar_select %p42, 0, %s41
      %s44 = sadd.s32 1, %s35
      %s45 = scalar_select %p42, %s44, %s35
      %p46 = scmp.ge.s32.totalorder %s45, 2
      %s47 = scalar_select %p46, 0, %s45
      %s48 = ssub.s32 %s35, %s47
      %s49 = ssub.s32 %s36, %s43
      %s50 = sor.u32 %s48, %s49
      %p51 = scmp.eq.s32.totalorder %s50, 0
      %s53 = sadd.s32 %s52, 1
      %s54 = scalar_select %p51, %s52, %s53
      %p57 = pneg %p51
      %p58 = scmp.eq.s32.totalorder %s28, 1
      %p59 = por %p57, %p58
      %p60 = scmp.ne.s32.totalorder %s52, %s55
      %p61 = scmp.eq.s32.totalorder %s28, 0
      %p62 = por %p60, %p61
      %p63 = scmp.ne.s32.totalorder %s52, %s55
      %p64 = scmp.eq.s32.totalorder %s33, 1
      %p65 = por %p63, %p64
      %p66 = scmp.ne.s32.totalorder %s55, %s56
      %p67 = scmp.eq.s32.totalorder %s33, 0
      %p68 = por %p66, %p67
      %p69 = scmp.ne.s32.totalorder %s55, %s56
      %p70 = scmp.eq.s32.totalorder %s34, 1
      %p71 = por %p69, %p70
      %p73 = scmp.ne.s32.totalorder %s56, %s72
      %p74 = scmp.eq.s32.totalorder %s34, 0
      %p75 = por %p73, %p74
      %s76 = ssub.s32 %s35, %s47
      %p77 = scmp.eq.s32.totalorder %s76, 0
      %s79 = sadd.s32 %s78, 1
      %s80 = scalar_select %p77, %s78, %s79
      %p83 = pneg %p77
      %p84 = scmp.eq.s32.totalorder %s28, 1
      %p85 = por %p83, %p84
      %p86 = scmp.ne.s32.totalorder %s78, %s81
      %p87 = scmp.eq.s32.totalorder %s28, 0
      %p88 = por %p86, %p87
      %p89 = scmp.ne.s32.totalorder %s78, %s81
      %p90 = scmp.eq.s32.totalorder %s33, 1
      %p91 = por %p89, %p90
      %p92 = scmp.ne.s32.totalorder %s81, %s82
      %p93 = scmp.eq.s32.totalorder %s33, 0
      %p94 = por %p92, %p93
      %p95 = scmp.ne.s32.totalorder %s81, %s82
      %p96 = scmp.eq.s32.totalorder %s34, 1
      %p97 = por %p95, %p96
      %p99 = scmp.ne.s32.totalorder %s82, %s98
      %p100 = scmp.eq.s32.totalorder %s34, 0
      %p101 = por %p99, %p100
      %s102 = ssub.s32 %s35, %s47
      %p103 = scmp.eq.s32.totalorder %s102, 0
      %s105 = sadd.s32 %s104, 1
      %s106 = scalar_select %p103, %s104, %s105
      %p109 = pneg %p103
      %p110 = scmp.eq.s32.totalorder %s28, 1
      %p111 = por %p109, %p110
      %p112 = scmp.ne.s32.totalorder %s104, %s107
      %p113 = scmp.eq.s32.totalorder %s28, 0
      %p114 = por %p112, %p113
      %p115 = scmp.ne.s32.totalorder %s104, %s107
      %p116 = scmp.eq.s32.totalorder %s33, 1
      %p117 = por %p115, %p116
      %p118 = scmp.ne.s32.totalorder %s107, %s108
      %p119 = scmp.eq.s32.totalorder %s33, 0
      %p120 = por %p118, %p119
      %p121 = scmp.ne.s32.totalorder %s107, %s108
      %p122 = scmp.eq.s32.totalorder %s34, 1
      %p123 = por %p121, %p122
      %p125 = scmp.ne.s32.totalorder %s108, %s124
      %p126 = scmp.eq.s32.totalorder %s34, 0
      %p127 = por %p125, %p126
      %s129 = sadd.s32 %s128, 1
      %p132 = scmp.eq.s32.totalorder %s28, 1
      %p133 = scmp.ne.s32.totalorder %s128, %s130
      %p134 = scmp.eq.s32.totalorder %s28, 0
      %p135 = por %p133, %p134
      %p136 = scmp.ne.s32.totalorder %s128, %s130
      %p137 = scmp.eq.s32.totalorder %s33, 1
      %p138 = por %p136, %p137
      %p139 = scmp.ne.s32.totalorder %s130, %s131
      %p140 = scmp.eq.s32.totalorder %s33, 0
      %p141 = por %p139, %p140
      %p142 = scmp.ne.s32.totalorder %s130, %s131
      %p143 = scmp.eq.s32.totalorder %s34, 1
      %p144 = por %p142, %p143
      %p146 = scmp.ne.s32.totalorder %s131, %s145
      %p147 = scmp.eq.s32.totalorder %s34, 0
      %p148 = por %p146, %p147
      %s150 = sadd.s32 %s149, 1
      %p153 = scmp.eq.s32.totalorder %s28, 1
      %p154 = scmp.ne.s32.totalorder %s149, %s151
      %p155 = scmp.eq.s32.totalorder %s28, 0
      %p156 = por %p154, %p155
      %p157 = scmp.ne.s32.totalorder %s149, %s151
      %p158 = scmp.eq.s32.totalorder %s33, 1
      %p159 = por %p157, %p158
      %p160 = scmp.ne.s32.totalorder %s151, %s152
      %p161 = scmp.eq.s32.totalorder %s33, 0
      %p162 = por %p160, %p161
      %p163 = scmp.ne.s32.totalorder %s151, %s152
      %p164 = scmp.eq.s32.totalorder %s34, 1
      %p165 = por %p163, %p164
      %p167 = scmp.ne.s32.totalorder %s152, %s166
      %p168 = scmp.eq.s32.totalorder %s34, 0
      %p169 = por %p167, %p168
      %s171 = sadd.s32 %s170, 1
      %p174 = scmp.eq.s32.totalorder %s28, 1
      %p175 = scmp.ne.s32.totalorder %s170, %s172
      %p176 = scmp.eq.s32.totalorder %s28, 0
      %p177 = por %p175, %p176
      %p178 = scmp.ne.s32.totalorder %s170, %s172
      %p179 = scmp.eq.s32.totalorder %s33, 1
      %p180 = por %p178, %p179
      %p181 = scmp.ne.s32.totalorder %s172, %s173
      %p182 = scmp.eq.s32.totalorder %s33, 0
      %p183 = por %p181, %p182
      %p184 = scmp.ne.s32.totalorder %s172, %s173
      %p185 = scmp.eq.s32.totalorder %s34, 1
      %p186 = por %p184, %p185
      %p188 = scmp.ne.s32.totalorder %s173, %s187
      %p189 = scmp.eq.s32.totalorder %s34, 0
      %p190 = por %p188, %p189
      %s192 = sadd.s32 %s191, 1
      %p195 = scmp.eq.s32.totalorder %s28, 1
      %p196 = scmp.ne.s32.totalorder %s191, %s193
      %p197 = scmp.eq.s32.totalorder %s28, 0
      %p198 = por %p196, %p197
      %p199 = scmp.ne.s32.totalorder %s191, %s193
      %p200 = scmp.eq.s32.totalorder %s33, 1
      %p201 = por %p199, %p200
      %p202 = scmp.ne.s32.totalorder %s193, %s194
      %p203 = scmp.eq.s32.totalorder %s33, 0
      %p204 = por %p202, %p203
      %p205 = scmp.ne.s32.totalorder %s193, %s194
      %p206 = scmp.eq.s32.totalorder %s34, 1
      %p207 = por %p205, %p206
      %p209 = scmp.ne.s32.totalorder %s194, %s208
      %p210 = scmp.eq.s32.totalorder %s34, 0
      %p211 = por %p209, %p210
      %s213 = sadd.s32 %s212, 1
      %p216 = scmp.eq.s32.totalorder %s28, 1
      %p217 = scmp.ne.s32.totalorder %s212, %s214
      %p218 = scmp.eq.s32.totalorder %s28, 0
      %p219 = por %p217, %p218
      %p220 = scmp.ne.s32.totalorder %s212, %s214
      %p221 = scmp.eq.s32.totalorder %s33, 1
      %p222 = por %p220, %p221
      %p223 = scmp.ne.s32.totalorder %s214, %s215
      %p224 = scmp.eq.s32.totalorder %s33, 0
      %p225 = por %p223, %p224
      %p226 = scmp.ne.s32.totalorder %s214, %s215
      %p227 = scmp.eq.s32.totalorder %s34, 1
      %p228 = por %p226, %p227
      %p230 = scmp.ne.s32.totalorder %s215, %s229
      %p231 = scmp.eq.s32.totalorder %s34, 0
      %p232 = por %p230, %p231
      %s234 = sadd.s32 %s233, 1
      %p237 = scmp.eq.s32.totalorder %s28, 1
      %p238 = scmp.ne.s32.totalorder %s233, %s235
      %p239 = scmp.eq.s32.totalorder %s28, 0
      %p240 = por %p238, %p239
      %p241 = scmp.ne.s32.totalorder %s233, %s235
      %p242 = scmp.eq.s32.totalorder %s33, 1
      %p243 = por %p241, %p242
      %p244 = scmp.ne.s32.totalorder %s235, %s236
      %p245 = scmp.eq.s32.totalorder %s33, 0
      %p246 = por %p244, %p245
      %p247 = scmp.ne.s32.totalorder %s235, %s236
      %p248 = scmp.eq.s32.totalorder %s34, 1
      %p249 = por %p247, %p248
      %p251 = scmp.ne.s32.totalorder %s236, %s250
      %p252 = scmp.eq.s32.totalorder %s34, 0
      %p253 = por %p251, %p252
      %s255 = sadd.s32 %s254, 1
      %p258 = scmp.eq.s32.totalorder %s28, 1
      %p259 = scmp.ne.s32.totalorder %s254, %s256
      %p260 = scmp.eq.s32.totalorder %s28, 0
      %p261 = por %p259, %p260
      %p262 = scmp.ne.s32.totalorder %s254, %s256
      %p263 = scmp.eq.s32.totalorder %s33, 1
      %p264 = por %p262, %p263
      %p265 = scmp.ne.s32.totalorder %s256, %s257
      %p266 = scmp.eq.s32.totalorder %s33, 0
      %p267 = por %p265, %p266
      %p268 = scmp.ne.s32.totalorder %s256, %s257
      %p269 = scmp.eq.s32.totalorder %s34, 1
      %p270 = por %p268, %p269
      %p272 = scmp.ne.s32.totalorder %s257, %s271
      %p273 = scmp.eq.s32.totalorder %s34, 0
      %p274 = por %p272, %p273
      %s276 = sadd.s32 %s275, 1
      %p279 = scmp.eq.s32.totalorder %s28, 1
      %p280 = scmp.ne.s32.totalorder %s275, %s277
      %p281 = scmp.eq.s32.totalorder %s28, 0
      %p282 = por %p280, %p281
      %p283 = scmp.ne.s32.totalorder %s275, %s277
      %p284 = scmp.eq.s32.totalorder %s33, 1
      %p285 = por %p283, %p284
      %p286 = scmp.ne.s32.totalorder %s277, %s278
      %p287 = scmp.eq.s32.totalorder %s33, 0
      %p288 = por %p286, %p287
      %p289 = scmp.ne.s32.totalorder %s277, %s278
      %p290 = scmp.eq.s32.totalorder %s34, 1
      %p291 = por %p289, %p290
      %p293 = scmp.ne.s32.totalorder %s278, %s292
      %p294 = scmp.eq.s32.totalorder %s34, 0
      %p295 = por %p293, %p294
      %s296 = ssub.s32 %s35, %s47
      %s297 = ssub.s32 %s36, %s43
      %s298 = sor.u32 %s296, %s297
      %p299 = scmp.eq.s32.totalorder %s298, 0
      %s301 = sadd.s32 %s300, 1
      %s302 = scalar_select %p299, %s300, %s301
      %p305 = pneg %p299
      %p306 = scmp.eq.s32.totalorder %s28, 1
      %p307 = por %p305, %p306
      %p308 = scmp.ne.s32.totalorder %s300, %s303
      %p309 = scmp.eq.s32.totalorder %s28, 0
      %p310 = por %p308, %p309
      %p311 = scmp.ne.s32.totalorder %s300, %s303
      %p312 = scmp.eq.s32.totalorder %s33, 1
      %p313 = por %p311, %p312
      %p314 = scmp.ne.s32.totalorder %s303, %s304
      %p315 = scmp.eq.s32.totalorder %s33, 0
      %p316 = por %p314, %p315
      %p317 = scmp.ne.s32.totalorder %s303, %s304
      %p318 = scmp.eq.s32.totalorder %s34, 1
      %p319 = por %p317, %p318
      %p321 = scmp.ne.s32.totalorder %s304, %s320
      %p322 = scmp.eq.s32.totalorder %s34, 0
      %p323 = por %p321, %p322
      %p324 = scmp.le.s32.totalorder 1, %s28
      %p325 = scmp.lt.s32.totalorder %s28, 3
      %p326 = pnand %p324, %p325
      %p327 = pneg %p326
      // Predicated region
      $region9: #{tpu_custom_call.1} parent=5 // pred_check
        _
      $region10: #{tpu_custom_call.1} parent=5 // pred_check_branch
        %329 = sbr.rel (%p326) target = $region12
      $region11: #{tpu_custom_call.1} parent=5 // pred_region
        %s330 = ssub.s32 %s28, 1
        // Predicated region
        $region13: #{tpu_custom_call.1} parent=11 // pred_check
          %p331 = pneg %p141
        $region14: #{tpu_custom_call.1} parent=11 // pred_check_branch
          %333 = sbr.rel (%p331) target = $region16
        $region15: #{tpu_custom_call.1} parent=11 // pred_region
          %s335 = ssub.s32 512, 512
          %336 = vsyncadd [#allocation12], %s335
          %s337 = sshll.u32 [#allocation11], 4
          %s338 = int_to_ptr.vmem [resolvable:$true] %s337
          %343 = dma.hbm_to_vmem [thread:$0]  %s3, 512, %s338, [#allocation12], 128, 128, 8
        $region16: #{tpu_custom_call.1} parent=11 // pred_fallthru
          _
        // Predicated region
        $region17: #{tpu_custom_call.1} parent=11 // pred_check
          %p344 = pneg %p162
        $region18: #{tpu_custom_call.1} parent=11 // pred_check_branch
          %346 = sbr.rel (%p344) target = $region20
        $region19: #{tpu_custom_call.1} parent=11 // pred_region
          _
        $region20: #{tpu_custom_call.1} parent=11 // pred_fallthru
          _
        // Predicated region
        $region21: #{tpu_custom_call.1} parent=11 // pred_check
          %p347 = pneg %p183
        $region22: #{tpu_custom_call.1} parent=11 // pred_check_branch
          %349 = sbr.rel (%p347) target = $region24
        $region23: #{tpu_custom_call.1} parent=11 // pred_region
          %s351 = ssub.s32 512, 512
          %352 = vsyncadd [#allocation12], %s351
          %s353 = sshll.u32 [#allocation13], 4
          %s354 = int_to_ptr.vmem [resolvable:$true] %s353
          %359 = dma.hbm_to_vmem [thread:$0]  %s5, 512, %s354, [#allocation12], 128, 128, 8
        $region24: #{tpu_custom_call.1} parent=11 // pred_fallthru
          _
        // Predicated region
        $region25: #{tpu_custom_call.1} parent=11 // pred_check
          %p360 = pneg %p204
        $region26: #{tpu_custom_call.1} parent=11 // pred_check_branch
          %362 = sbr.rel (%p360) target = $region28
        $region27: #{tpu_custom_call.1} parent=11 // pred_region
          _
        $region28: #{tpu_custom_call.1} parent=11 // pred_fallthru
          _
        // Predicated region
        $region29: #{tpu_custom_call.1} parent=11 // pred_check
          %p363 = pneg %p225
        $region30: #{tpu_custom_call.1} parent=11 // pred_check_branch
          %365 = sbr.rel (%p363) target = $region32
        $region31: #{tpu_custom_call.1} parent=11 // pred_region
          %s367 = ssub.s32 512, 512
          %368 = vsyncadd [#allocation15], %s367
          %s369 = sshll.u32 [#allocation14], 4
          %s370 = int_to_ptr.vmem [resolvable:$true] %s369
          %375 = dma.hbm_to_vmem [thread:$0]  %s7, 512, %s370, [#allocation15], 128, 128, 8
        $region32: #{tpu_custom_call.1} parent=11 // pred_fallthru
          _
        // Predicated region
        $region33: #{tpu_custom_call.1} parent=11 // pred_check
          %p376 = pneg %p246
        $region34: #{tpu_custom_call.1} parent=11 // pred_check_branch
          %378 = sbr.rel (%p376) target = $region36
        $region35: #{tpu_custom_call.1} parent=11 // pred_region
          _
        $region36: #{tpu_custom_call.1} parent=11 // pred_fallthru
          _
        // Predicated region
        $region37: #{tpu_custom_call.1} parent=11 // pred_check
          %p379 = pneg %p267
        $region38: #{tpu_custom_call.1} parent=11 // pred_check_branch
          %381 = sbr.rel (%p379) target = $region40
        $region39: #{tpu_custom_call.1} parent=11 // pred_region
          %s383 = ssub.s32 512, 512
          %384 = vsyncadd [#allocation15], %s383
          %s385 = sshll.u32 [#allocation16], 4
          %s386 = int_to_ptr.vmem [resolvable:$true] %s385
          %391 = dma.hbm_to_vmem [thread:$0]  %s9, 512, %s386, [#allocation15], 128, 128, 8
        $region40: #{tpu_custom_call.1} parent=11 // pred_fallthru
          _
        // Predicated region
        $region41: #{tpu_custom_call.1} parent=11 // pred_check
          %p392 = pneg %p288
        $region42: #{tpu_custom_call.1} parent=11 // pred_check_branch
          %394 = sbr.rel (%p392) target = $region44
        $region43: #{tpu_custom_call.1} parent=11 // pred_region
          _
        $region44: #{tpu_custom_call.1} parent=11 // pred_fallthru
          _
      $region12: #{tpu_custom_call.1} parent=5 // pred_fallthru
        _
      %p395 = scmp.lt.s32.totalorder %s28, 2
      // Predicated region
      $region45: #{tpu_custom_call.1} parent=5 // pred_check
        %p396 = pneg %p395
      $region46: #{tpu_custom_call.1} parent=5 // pred_check_branch
        %398 = sbr.rel (%p396) target = $region48
      $region47: #{tpu_custom_call.1} parent=5 // pred_region
        // Predicated region
        $region49: #{tpu_custom_call.1} parent=47 // pred_check
          %p399 = pneg %p62
        $region50: #{tpu_custom_call.1} parent=47 // pred_check_branch
          %401 = sbr.rel (%p399) target = $region52
        $region51: #{tpu_custom_call.1} parent=47 // pred_region
          %s402 = sand.u32 %s52, 1
          %s403 = scalar_lea.sflag [#allocation6], %s402
          %s404 = sand.u32 %s52, 1
          %s405 = smul.addr %s404, 8
          %s406 = scalar_lea.vmem [#allocation5], %s405
          %s408 = ssub.s32 128, 128
          %409 = vsyncadd %s403, %s408
          %s410 = sadd.s32 %s36, %s35
          %s411 = smul.addr %s410, 128
          %s412 = scalar_lea.hbm %s0, %s411
          %s414 = sshll.u32 %s406, 4
          %s415 = int_to_ptr.vmem [resolvable:$true] %s414
          %417 = dma.hbm_to_vmem [thread:$0]  %s412, 128, %s415, %s403
        $region52: #{tpu_custom_call.1} parent=47 // pred_fallthru
          _
        // Predicated region
        $region53: #{tpu_custom_call.1} parent=47 // pred_check
          %p418 = pneg %p88
        $region54: #{tpu_custom_call.1} parent=47 // pred_check_branch
          %420 = sbr.rel (%p418) target = $region56
        $region55: #{tpu_custom_call.1} parent=47 // pred_region
          %s421 = sand.u32 %s28, 1
          %s422 = scalar_lea.sflag [#allocation9], %s421
          %s423 = sand.u32 %s78, 1
          %s424 = smul.addr %s423, 8
          %s425 = scalar_lea.vmem [#allocation8], %s424
          %s427 = ssub.s32 128, 128
          %428 = vsyncadd %s422, %s427
          %s429 = smul.addr %s35, 128
          %s430 = scalar_lea.hbm %s1, %s429
          %s432 = sshll.u32 %s425, 4
          %s433 = int_to_ptr.vmem [resolvable:$true] %s432
          %435 = dma.hbm_to_vmem [thread:$0]  %s430, 128, %s433, %s422
        $region56: #{tpu_custom_call.1} parent=47 // pred_fallthru
          _
        // Predicated region
        $region57: #{tpu_custom_call.1} parent=47 // pred_check
          %p436 = pneg %p114
        $region58: #{tpu_custom_call.1} parent=47 // pred_check_branch
          %438 = sbr.rel (%p436) target = $region60
        $region59: #{tpu_custom_call.1} parent=47 // pred_region
          %s439 = sand.u32 %s28, 1
          %s440 = scalar_lea.sflag [#allocation9], %s439
          %s441 = sand.u32 %s104, 1
          %s442 = smul.addr %s441, 8
          %s443 = scalar_lea.vmem [#allocation10], %s442
          %s445 = ssub.s32 128, 128
          %446 = vsyncadd %s440, %s445
          %s447 = smul.addr %s35, 128
          %s448 = scalar_lea.hbm %s2, %s447
          %s450 = sshll.u32 %s443, 4
          %s451 = int_to_ptr.vmem [resolvable:$true] %s450
          %453 = dma.hbm_to_vmem [thread:$0]  %s448, 128, %s451, %s440
        $region60: #{tpu_custom_call.1} parent=47 // pred_fallthru
          _
      $region48: #{tpu_custom_call.1} parent=5 // pred_fallthru
        _
      %p454 = scmp.le.s32.totalorder 1, %s28
      %p455 = scmp.lt.s32.totalorder %s28, 3
      %p456 = pnand %p454, %p455
      %p457 = pneg %p456
      // Predicated region
      $region61: #{tpu_custom_call.1} parent=5 // pred_check
        _
      $region62: #{tpu_custom_call.1} parent=5 // pred_check_branch
        %459 = sbr.rel (%p456) target = $region64
      $region63: #{tpu_custom_call.1} parent=5 // pred_region
        %s460 = ssub.s32 %s28, 1
        %s461 = sand.u32 %s55, 1
        %s462 = scalar_lea.sflag [#allocation6], %s461
        %s463 = sand.u32 %s55, 1
        %s464 = smul.addr %s463, 8
        %s465 = scalar_lea.vmem [#allocation5], %s464
        // Predicated region
        $region65: #{tpu_custom_call.1} parent=63 // pred_check
          %p466 = pneg %p68
        $region66: #{tpu_custom_call.1} parent=63 // pred_check_branch
          %468 = sbr.rel (%p466) target = $region68
        $region67: #{tpu_custom_call.1} parent=63 // pred_region
          %469 = dma.done %s462, 128
        $region68: #{tpu_custom_call.1} parent=63 // pred_fallthru
          _
        %s470 = sand.u32 %s33, 1
        %s471 = scalar_lea.sflag [#allocation9], %s470
        %s472 = sand.u32 %s81, 1
        %s473 = smul.addr %s472, 8
        %s474 = scalar_lea.vmem [#allocation8], %s473
        // Predicated region
        $region69: #{tpu_custom_call.1} parent=63 // pred_check
          %p475 = pneg %p94
        $region70: #{tpu_custom_call.1} parent=63 // pred_check_branch
          %477 = sbr.rel (%p475) target = $region72
        $region71: #{tpu_custom_call.1} parent=63 // pred_region
          %478 = dma.done %s471, 128
        $region72: #{tpu_custom_call.1} parent=63 // pred_fallthru
          _
        %s479 = sand.u32 %s33, 1
        %s480 = scalar_lea.sflag [#allocation9], %s479
        %s481 = sand.u32 %s107, 1
        %s482 = smul.addr %s481, 8
        %s483 = scalar_lea.vmem [#allocation10], %s482
        // Predicated region
        $region73: #{tpu_custom_call.1} parent=63 // pred_check
          %p484 = pneg %p120
        $region74: #{tpu_custom_call.1} parent=63 // pred_check_branch
          %486 = sbr.rel (%p484) target = $region76
        $region75: #{tpu_custom_call.1} parent=63 // pred_region
          %487 = dma.done %s480, 128
        $region76: #{tpu_custom_call.1} parent=63 // pred_fallthru
          _
        // Predicated region
        $region77: #{tpu_custom_call.1} parent=63 // pred_check
          %p488 = pneg %p141
        $region78: #{tpu_custom_call.1} parent=63 // pred_check_branch
          %490 = sbr.rel (%p488) target = $region80
        $region79: #{tpu_custom_call.1} parent=63 // pred_region
          %491 = dma.done [#allocation12], 512
        $region80: #{tpu_custom_call.1} parent=63 // pred_fallthru
          _
        // Predicated region
        $region81: #{tpu_custom_call.1} parent=63 // pred_check
          %p492 = pneg %p183
        $region82: #{tpu_custom_call.1} parent=63 // pred_check_branch
          %494 = sbr.rel (%p492) target = $region84
        $region83: #{tpu_custom_call.1} parent=63 // pred_region
          %495 = dma.done [#allocation12], 512
        $region84: #{tpu_custom_call.1} parent=63 // pred_fallthru
          _
        // Predicated region
        $region85: #{tpu_custom_call.1} parent=63 // pred_check
          %p496 = pneg %p225
        $region86: #{tpu_custom_call.1} parent=63 // pred_check_branch
          %498 = sbr.rel (%p496) target = $region88
        $region87: #{tpu_custom_call.1} parent=63 // pred_region
          %499 = dma.done [#allocation15], 512
        $region88: #{tpu_custom_call.1} parent=63 // pred_fallthru
          _
        // Predicated region
        $region89: #{tpu_custom_call.1} parent=63 // pred_check
          %p500 = pneg %p267
        $region90: #{tpu_custom_call.1} parent=63 // pred_check_branch
          %502 = sbr.rel (%p500) target = $region92
        $region91: #{tpu_custom_call.1} parent=63 // pred_region
          %503 = dma.done [#allocation15], 512
        $region92: #{tpu_custom_call.1} parent=63 // pred_fallthru
          _
        %s504 = sand.u32 %s55, 1
        %s505 = scalar_lea.sflag [#allocation6], %s504
        %s506 = sand.u32 %s55, 1
        %s507 = smul.addr %s506, 8
        %s508 = scalar_lea.vmem [#allocation5], %s507
        %p509 = pneg %p68
        %p510 = pneg %p65
        %s511 = sand.u32 %s33, 1
        %s512 = scalar_lea.sflag [#allocation9], %s511
        %s513 = sand.u32 %s81, 1
        %s514 = smul.addr %s513, 8
        %s515 = scalar_lea.vmem [#allocation8], %s514
        %p516 = pneg %p94
        %p517 = pneg %p91
        %s518 = sand.u32 %s33, 1
        %s519 = scalar_lea.sflag [#allocation9], %s518
        %s520 = sand.u32 %s107, 1
        %s521 = smul.addr %s520, 8
        %s522 = scalar_lea.vmem [#allocation10], %s521
        %p523 = pneg %p120
        %p524 = pneg %p117
        %p525 = pneg %p141
        %p526 = pneg %p138
        %p527 = pneg %p162
        %p528 = pneg %p159
        %p529 = pneg %p183
        %p530 = pneg %p180
        %p531 = pneg %p204
        %p532 = pneg %p201
        %p533 = pneg %p225
        %p534 = pneg %p222
        %p535 = pneg %p246
        %p536 = pneg %p243
        %p537 = pneg %p267
        %p538 = pneg %p264
        %p539 = pneg %p288
        %p540 = pneg %p285
        %p541 = pneg %p316
        %p542 = pneg %p313
        %s543 = sand.u32 %s303, 1
        %s544 = scalar_lea.sflag [#allocation7], %s543
        %s545 = sand.u32 %s303, 1
        %s546 = smul.addr %s545, 8
        %s547 = scalar_lea.vmem [#allocation17], %s546
        %p548 = scmp.eq.s32.totalorder %s38, 0
        // Predicated region
        $region93: #{tpu_custom_call.1} parent=63 // pred_check
          %p549 = pneg %p548
        $region94: #{tpu_custom_call.1} parent=63 // pred_check_branch
          %551 = sbr.rel (%p549) target = $region96
        $region95: #{tpu_custom_call.1} parent=63 // pred_region
          %v552 = vld [vmem:[%s474] sm:$0xff]
          %v553 = vld [vmem:[%s483] sm:$0xff]
          %v554 = vld [vmem:[#allocation13] sm:$0xff]
          %v555 = vld [vmem:[#allocation13 + $0x8] sm:$0xff]
          %v556 = vld [vmem:[#allocation13 + $0x10] sm:$0xff]
          %v557 = vld [vmem:[#allocation13 + $0x18] sm:$0xff]
          %v558 = vld [vmem:[%s6] sm:$0x1]
          %v560 = vlaneseq
          %v561 = vshrl.u32 %v560, 7
          %v562 = vsub.s32 0, %v561
          %v563 = vrot.slane %v558, %v562
          %vm565 = vcmask 261120
          %v567 = vsel %vm565, %v552, 0
          %569 = vmatprep.subr.mxu0 0.0
          %570 = vmatpush1.msra.mxu0 0.0
          %571 = vmatprep.subr.mxu0 0.0
          %572 = vmatpush1.msra.mxu0 0.0
          %573 = vmatprep.subr.mxu0 0.0
          %574 = vmatpush1.msra.mxu0 0.0
          %575 = vmatprep.subr.mxu0 0.0
          %576 = vmatpush1.msra.mxu0 0.0
          %577 = vmatprep.subr.mxu0 0.0
          %578 = vmatpush1.msra.mxu0 0.0
          %579 = vmatprep.subr.mxu0 0.0
          %580 = vmatpush1.msra.mxu0 0.0
          %581 = vmatprep.subr.mxu0 0.0
          %582 = vmatpush1.msra.mxu0 0.0
          %583 = vmatprep.subr.mxu0 0.0
          %584 = vmatpush1.msra.mxu0 0.0
          %585 = vmatprep.subr.mxu0 0.0
          %586 = vmatpush1.msra.mxu0 0.0
          %587 = vmatprep.subr.mxu0 0.0
          %588 = vmatpush1.msra.mxu0 0.0
          %589 = vmatprep.subr.mxu0 0.0
          %590 = vmatpush1.msra.mxu0 0.0
          %591 = vmatprep.subr.mxu0 0.0
          %592 = vmatpush1.msra.mxu0 0.0
          %593 = vmatprep.subr.mxu0 0.0
          %594 = vmatpush1.msra.mxu0 %v557
          %595 = vmatprep.subr.mxu0 0.0
          %596 = vmatpush1.msra.mxu0 %v556
          %597 = vmatprep.subr.mxu0 0.0
          %598 = vmatpush1.msra.mxu0 %v555
          %599 = vmatprep.subr.mxu0 0.0
          %600 = vmatpush1.msra.mxu0 %v554
          %601 = vmatprep.subr.mxu0 0.0
          %602 = vmatpush2.msra.mxu0 0.0
          %603 = vmatprep.subr.mxu0 0.0
          %604 = vmatpush2.msra.mxu0 0.0
          %605 = vmatprep.subr.mxu0 0.0
          %606 = vmatpush2.msra.mxu0 0.0
          %607 = vmatprep.subr.mxu0 0.0
          %608 = vmatpush2.msra.mxu0 0.0
          %609 = vmatprep.subr.mxu0 0.0
          %610 = vmatpush2.msra.mxu0 0.0
          %611 = vmatprep.subr.mxu0 0.0
          %612 = vmatpush2.msra.mxu0 0.0
          %613 = vmatprep.subr.mxu0 0.0
          %614 = vmatpush2.msra.mxu0 0.0
          %615 = vmatprep.subr.mxu0 0.0
          %616 = vmatpush2.msra.mxu0 0.0
          %617 = vmatprep.subr.mxu0 0.0
          %618 = vmatpush2.msra.mxu0 0.0
          %619 = vmatprep.subr.mxu0 0.0
          %620 = vmatpush2.msra.mxu0 0.0
          %621 = vmatprep.subr.mxu0 0.0
          %622 = vmatpush2.msra.mxu0 0.0
          %623 = vmatprep.subr.mxu0 0.0
          %624 = vmatpush2.msra.mxu0 0.0
          %625 = vmatprep.subr.mxu0 0.0
          %626 = vmatpush2.msra.mxu0 0.0
          %627 = vmatprep.subr.mxu0 0.0
          %628 = vmatpush2.msra.mxu0 0.0
          %629 = vmatprep.subr.mxu0 0.0
          %630 = vmatpush2.msra.mxu0 0.0
          %631 = vmatprep.subr.mxu0 0.0
          %632 = vmatpush2.msra.mxu0 0.0
          %633 = vmatprep.mubr.f32.mxu0 0.0
          %634 = vmatmul.mubr.f32.gmra.mxu0 %v567
          %v635 = vpop.f32.mrf.mxu0
          %v636 = vadd.f32 %v563, %v635
          %v637 = vpop.f32.mrf.mxu0
          %638 = vdwg.mxu0
          %v639 = vld [vmem:[#allocation14] sm:$0xff]
          %v640 = vld [vmem:[#allocation14 + $0x8] sm:$0xff]
          %v641 = vld [vmem:[#allocation14 + $0x10] sm:$0xff]
          %v642 = vld [vmem:[#allocation14 + $0x18] sm:$0xff]
          %v643 = vld [vmem:[%s8] sm:$0x1]
          %v645 = vlaneseq
          %v646 = vshrl.u32 %v645, 7
          %v647 = vsub.s32 0, %v646
          %v648 = vrot.slane %v643, %v647
          %v651 = vsel %vm565, %v553, 0
          %653 = vmatprep.subr.mxu0 0.0
          %654 = vmatpush1.msra.mxu0 0.0
          %655 = vmatprep.subr.mxu0 0.0
          %656 = vmatpush1.msra.mxu0 0.0
          %657 = vmatprep.subr.mxu0 0.0
          %658 = vmatpush1.msra.mxu0 0.0
          %659 = vmatprep.subr.mxu0 0.0
          %660 = vmatpush1.msra.mxu0 0.0
          %661 = vmatprep.subr.mxu0 0.0
          %662 = vmatpush1.msra.mxu0 0.0
          %663 = vmatprep.subr.mxu0 0.0
          %664 = vmatpush1.msra.mxu0 0.0
          %665 = vmatprep.subr.mxu0 0.0
          %666 = vmatpush1.msra.mxu0 0.0
          %667 = vmatprep.subr.mxu0 0.0
          %668 = vmatpush1.msra.mxu0 0.0
          %669 = vmatprep.subr.mxu0 0.0
          %670 = vmatpush1.msra.mxu0 0.0
          %671 = vmatprep.subr.mxu0 0.0
          %672 = vmatpush1.msra.mxu0 0.0
          %673 = vmatprep.subr.mxu0 0.0
          %674 = vmatpush1.msra.mxu0 0.0
          %675 = vmatprep.subr.mxu0 0.0
          %676 = vmatpush1.msra.mxu0 0.0
          %677 = vmatprep.subr.mxu0 0.0
          %678 = vmatpush1.msra.mxu0 %v642
          %679 = vmatprep.subr.mxu0 0.0
          %680 = vmatpush1.msra.mxu0 %v641
          %681 = vmatprep.subr.mxu0 0.0
          %682 = vmatpush1.msra.mxu0 %v640
          %683 = vmatprep.subr.mxu0 0.0
          %684 = vmatpush1.msra.mxu0 %v639
          %685 = vmatprep.subr.mxu0 0.0
          %686 = vmatpush2.msra.mxu0 0.0
          %687 = vmatprep.subr.mxu0 0.0
          %688 = vmatpush2.msra.mxu0 0.0
          %689 = vmatprep.subr.mxu0 0.0
          %690 = vmatpush2.msra.mxu0 0.0
          %691 = vmatprep.subr.mxu0 0.0
          %692 = vmatpush2.msra.mxu0 0.0
          %693 = vmatprep.subr.mxu0 0.0
          %694 = vmatpush2.msra.mxu0 0.0
          %695 = vmatprep.subr.mxu0 0.0
          %696 = vmatpush2.msra.mxu0 0.0
          %697 = vmatprep.subr.mxu0 0.0
          %698 = vmatpush2.msra.mxu0 0.0
          %699 = vmatprep.subr.mxu0 0.0
          %700 = vmatpush2.msra.mxu0 0.0
          %701 = vmatprep.subr.mxu0 0.0
          %702 = vmatpush2.msra.mxu0 0.0
          %703 = vmatprep.subr.mxu0 0.0
          %704 = vmatpush2.msra.mxu0 0.0
          %705 = vmatprep.subr.mxu0 0.0
          %706 = vmatpush2.msra.mxu0 0.0
          %707 = vmatprep.subr.mxu0 0.0
          %708 = vmatpush2.msra.mxu0 0.0
          %709 = vmatprep.subr.mxu0 0.0
          %710 = vmatpush2.msra.mxu0 0.0
          %711 = vmatprep.subr.mxu0 0.0
          %712 = vmatpush2.msra.mxu0 0.0
          %713 = vmatprep.subr.mxu0 0.0
          %714 = vmatpush2.msra.mxu0 0.0
          %715 = vmatprep.subr.mxu0 0.0
          %716 = vmatpush2.msra.mxu0 0.0
          %717 = vmatprep.mubr.f32.mxu0 0.0
          %718 = vmatmul.mubr.f32.gmra.mxu0 %v651
          %v719 = vpop.f32.mrf.mxu0
          %v720 = vadd.f32 %v648, %v719
          %v721 = vpop.f32.mrf.mxu0
          %722 = vdwg.mxu0
          %723 = vst.msk [vmem:[#allocation2] sm:$0xff] %vm565, %v636
          %724 = vst.msk [vmem:[#allocation3] sm:$0xff] %vm565, %v720
        $region96: #{tpu_custom_call.1} parent=63 // pred_fallthru
          _
        %v725 = vld [vmem:[%s465] sm:$0xff]
        %v726 = vld [vmem:[#allocation11] sm:$0xff]
        %v727 = vld [vmem:[#allocation11 + $0x8] sm:$0xff]
        %v728 = vld [vmem:[#allocation11 + $0x10] sm:$0xff]
        %v729 = vld [vmem:[#allocation11 + $0x18] sm:$0xff]
        %v730 = vld [vmem:[%s4] sm:$0x1]
        %v732 = vlaneseq
        %v733 = vshrl.u32 %v732, 7
        %v734 = vsub.s32 0, %v733
        %v735 = vrot.slane %v730, %v734
        %vm737 = vcmask 261120
        %v739 = vsel %vm737, %v725, 0
        %741 = vmatprep.subr.mxu0 0.0
        %742 = vmatpush1.msra.mxu0 0.0
        %743 = vmatprep.subr.mxu0 0.0
        %744 = vmatpush1.msra.mxu0 0.0
        %745 = vmatprep.subr.mxu0 0.0
        %746 = vmatpush1.msra.mxu0 0.0
        %747 = vmatprep.subr.mxu0 0.0
        %748 = vmatpush1.msra.mxu0 0.0
        %749 = vmatprep.subr.mxu0 0.0
        %750 = vmatpush1.msra.mxu0 0.0
        %751 = vmatprep.subr.mxu0 0.0
        %752 = vmatpush1.msra.mxu0 0.0
        %753 = vmatprep.subr.mxu0 0.0
        %754 = vmatpush1.msra.mxu0 0.0
        %755 = vmatprep.subr.mxu0 0.0
        %756 = vmatpush1.msra.mxu0 0.0
        %757 = vmatprep.subr.mxu0 0.0
        %758 = vmatpush1.msra.mxu0 0.0
        %759 = vmatprep.subr.mxu0 0.0
        %760 = vmatpush1.msra.mxu0 0.0
        %761 = vmatprep.subr.mxu0 0.0
        %762 = vmatpush1.msra.mxu0 0.0
        %763 = vmatprep.subr.mxu0 0.0
        %764 = vmatpush1.msra.mxu0 0.0
        %765 = vmatprep.subr.mxu0 0.0
        %766 = vmatpush1.msra.mxu0 %v729
        %767 = vmatprep.subr.mxu0 0.0
        %768 = vmatpush1.msra.mxu0 %v728
        %769 = vmatprep.subr.mxu0 0.0
        %770 = vmatpush1.msra.mxu0 %v727
        %771 = vmatprep.subr.mxu0 0.0
        %772 = vmatpush1.msra.mxu0 %v726
        %773 = vmatprep.subr.mxu0 0.0
        %774 = vmatpush2.msra.mxu0 0.0
        %775 = vmatprep.subr.mxu0 0.0
        %776 = vmatpush2.msra.mxu0 0.0
        %777 = vmatprep.subr.mxu0 0.0
        %778 = vmatpush2.msra.mxu0 0.0
        %779 = vmatprep.subr.mxu0 0.0
        %780 = vmatpush2.msra.mxu0 0.0
        %781 = vmatprep.subr.mxu0 0.0
        %782 = vmatpush2.msra.mxu0 0.0
        %783 = vmatprep.subr.mxu0 0.0
        %784 = vmatpush2.msra.mxu0 0.0
        %785 = vmatprep.subr.mxu0 0.0
        %786 = vmatpush2.msra.mxu0 0.0
        %787 = vmatprep.subr.mxu0 0.0
        %788 = vmatpush2.msra.mxu0 0.0
        %789 = vmatprep.subr.mxu0 0.0
        %790 = vmatpush2.msra.mxu0 0.0
        %791 = vmatprep.subr.mxu0 0.0
        %792 = vmatpush2.msra.mxu0 0.0
        %793 = vmatprep.subr.mxu0 0.0
        %794 = vmatpush2.msra.mxu0 0.0
        %795 = vmatprep.subr.mxu0 0.0
        %796 = vmatpush2.msra.mxu0 0.0
        %797 = vmatprep.subr.mxu0 0.0
        %798 = vmatpush2.msra.mxu0 0.0
        %799 = vmatprep.subr.mxu0 0.0
        %800 = vmatpush2.msra.mxu0 0.0
        %801 = vmatprep.subr.mxu0 0.0
        %802 = vmatpush2.msra.mxu0 0.0
        %803 = vmatprep.subr.mxu0 0.0
        %804 = vmatpush2.msra.mxu0 0.0
        %805 = vmatprep.mubr.f32.mxu0 0.0
        %806 = vmatmul.mubr.f32.gmra.mxu0 %v739
        %v807 = vpop.f32.mrf.mxu0
        %v808 = vadd.f32 %v735, %v807
        %v809 = vpop.f32.mrf.mxu0
        %810 = vdwg.mxu0
        %v811 = vmul.f32 %v808, 0.35355338
        %v812 = vld [vmem:[#allocation2] sm:$0xff]
        %v813 = vld [vmem:[#allocation3] sm:$0xff]
        %vm814 = vcmask 64512
        %v816 = vsel %vm814, %v811, 0
        %v819 = vsel %vm814, %v812, 0
        %821 = vmatprep.subr.mxu0 0.0
        %822 = vmatpush1.xpose.msra.mxu0 0.0
        %823 = vmatprep.subr.mxu0 0.0
        %824 = vmatpush1.xpose.msra.mxu0 0.0
        %825 = vmatprep.subr.mxu0 0.0
        %826 = vmatpush1.xpose.msra.mxu0 0.0
        %827 = vmatprep.subr.mxu0 0.0
        %828 = vmatpush1.xpose.msra.mxu0 0.0
        %829 = vmatprep.subr.mxu0 0.0
        %830 = vmatpush1.xpose.msra.mxu0 0.0
        %831 = vmatprep.subr.mxu0 0.0
        %832 = vmatpush1.xpose.msra.mxu0 0.0
        %833 = vmatprep.subr.mxu0 0.0
        %834 = vmatpush1.xpose.msra.mxu0 0.0
        %835 = vmatprep.subr.mxu0 0.0
        %836 = vmatpush1.xpose.msra.mxu0 0.0
        %837 = vmatprep.subr.mxu0 0.0
        %838 = vmatpush1.xpose.msra.mxu0 0.0
        %839 = vmatprep.subr.mxu0 0.0
        %840 = vmatpush1.xpose.msra.mxu0 0.0
        %841 = vmatprep.subr.mxu0 0.0
        %842 = vmatpush1.xpose.msra.mxu0 0.0
        %843 = vmatprep.subr.mxu0 0.0
        %844 = vmatpush1.xpose.msra.mxu0 0.0
        %845 = vmatprep.subr.mxu0 0.0
        %846 = vmatpush1.xpose.msra.mxu0 0.0
        %847 = vmatprep.subr.mxu0 0.0
        %848 = vmatpush1.xpose.msra.mxu0 0.0
        %849 = vmatprep.subr.mxu0 0.0
        %850 = vmatpush1.xpose.msra.mxu0 0.0
        %851 = vmatprep.subr.mxu0 0.0
        %852 = vmatpush1.xpose.msra.mxu0 %v819
        %853 = vmatprep.subr.mxu0 0.0
        %854 = vmatpush2.xpose.msra.mxu0 0.0
        %855 = vmatprep.subr.mxu0 0.0
        %856 = vmatpush2.xpose.msra.mxu0 0.0
        %857 = vmatprep.subr.mxu0 0.0
        %858 = vmatpush2.xpose.msra.mxu0 0.0
        %859 = vmatprep.subr.mxu0 0.0
        %860 = vmatpush2.xpose.msra.mxu0 0.0
        %861 = vmatprep.subr.mxu0 0.0
        %862 = vmatpush2.xpose.msra.mxu0 0.0
        %863 = vmatprep.subr.mxu0 0.0
        %864 = vmatpush2.xpose.msra.mxu0 0.0
        %865 = vmatprep.subr.mxu0 0.0
        %866 = vmatpush2.xpose.msra.mxu0 0.0
        %867 = vmatprep.subr.mxu0 0.0
        %868 = vmatpush2.xpose.msra.mxu0 0.0
        %869 = vmatprep.subr.mxu0 0.0
        %870 = vmatpush2.xpose.msra.mxu0 0.0
        %871 = vmatprep.subr.mxu0 0.0
        %872 = vmatpush2.xpose.msra.mxu0 0.0
        %873 = vmatprep.subr.mxu0 0.0
        %874 = vmatpush2.xpose.msra.mxu0 0.0
        %875 = vmatprep.subr.mxu0 0.0
        %876 = vmatpush2.xpose.msra.mxu0 0.0
        %877 = vmatprep.subr.mxu0 0.0
        %878 = vmatpush2.xpose.msra.mxu0 0.0
        %879 = vmatprep.subr.mxu0 0.0
        %880 = vmatpush2.xpose.msra.mxu0 0.0
        %881 = vmatprep.subr.mxu0 0.0
        %882 = vmatpush2.xpose.msra.mxu0 0.0
        %883 = vmatprep.subr.mxu0 0.0
        %884 = vmatpush2.xpose.msra.mxu0 0.0
        %885 = vmatprep.mubr.f32.mxu0 0.0
        %886 = vmatmul.mubr.f32.gmra.mxu0 %v816
        %v887 = vpop.f32.mrf.mxu0
        %v888 = vadd.f32 0.0, %v887
        %v889 = vpop.f32.mrf.mxu0
        %890 = vdwg.mxu0
        %v891 = vsel %vm814, %v888, -inf
        %892 = vmax.xlane.f32.xlu0 %v891
        %v893 = vpop.xlane.xlu0 %892
        %v894 = vsub.f32 %v888, %v893
        %v895 = vmul.f32 %v894, 1.442695
        %v896 = vpow.pop %v895
        %v897 = vsel %vm814, %v896, 0.0
        %898 = vadd.xlane.f32.xlu0 %v897
        %v899 = vpop.xlane.xlu0 %898
        %v901 = vsel %vm814, %v896, 0
        %903 = vmatprep.subr.mxu0 0.0
        %904 = vmatpush1.msra.mxu0 0.0
        %905 = vmatprep.subr.mxu0 0.0
        %906 = vmatpush1.msra.mxu0 0.0
        %907 = vmatprep.subr.mxu0 0.0
        %908 = vmatpush1.msra.mxu0 0.0
        %909 = vmatprep.subr.mxu0 0.0
        %910 = vmatpush1.msra.mxu0 0.0
        %911 = vmatprep.subr.mxu0 0.0
        %912 = vmatpush1.msra.mxu0 0.0
        %913 = vmatprep.subr.mxu0 0.0
        %914 = vmatpush1.msra.mxu0 0.0
        %915 = vmatprep.subr.mxu0 0.0
        %916 = vmatpush1.msra.mxu0 0.0
        %917 = vmatprep.subr.mxu0 0.0
        %918 = vmatpush1.msra.mxu0 0.0
        %919 = vmatprep.subr.mxu0 0.0
        %920 = vmatpush1.msra.mxu0 0.0
        %921 = vmatprep.subr.mxu0 0.0
        %922 = vmatpush1.msra.mxu0 0.0
        %923 = vmatprep.subr.mxu0 0.0
        %924 = vmatpush1.msra.mxu0 0.0
        %925 = vmatprep.subr.mxu0 0.0
        %926 = vmatpush1.msra.mxu0 0.0
        %927 = vmatprep.subr.mxu0 0.0
        %928 = vmatpush1.msra.mxu0 0.0
        %929 = vmatprep.subr.mxu0 0.0
        %930 = vmatpush1.msra.mxu0 0.0
        %931 = vmatprep.subr.mxu0 0.0
        %932 = vmatpush1.msra.mxu0 0.0
        %933 = vmatprep.subr.mxu0 0.0
        %934 = vmatpush1.msra.mxu0 %v813
        %935 = vmatprep.subr.mxu0 0.0
        %936 = vmatpush2.msra.mxu0 0.0
        %937 = vmatprep.subr.mxu0 0.0
        %938 = vmatpush2.msra.mxu0 0.0
        %939 = vmatprep.subr.mxu0 0.0
        %940 = vmatpush2.msra.mxu0 0.0
        %941 = vmatprep.subr.mxu0 0.0
        %942 = vmatpush2.msra.mxu0 0.0
        %943 = vmatprep.subr.mxu0 0.0
        %944 = vmatpush2.msra.mxu0 0.0
        %945 = vmatprep.subr.mxu0 0.0
        %946 = vmatpush2.msra.mxu0 0.0
        %947 = vmatprep.subr.mxu0 0.0
        %948 = vmatpush2.msra.mxu0 0.0
        %949 = vmatprep.subr.mxu0 0.0
        %950 = vmatpush2.msra.mxu0 0.0
        %951 = vmatprep.subr.mxu0 0.0
        %952 = vmatpush2.msra.mxu0 0.0
        %953 = vmatprep.subr.mxu0 0.0
        %954 = vmatpush2.msra.mxu0 0.0
        %955 = vmatprep.subr.mxu0 0.0
        %956 = vmatpush2.msra.mxu0 0.0
        %957 = vmatprep.subr.mxu0 0.0
        %958 = vmatpush2.msra.mxu0 0.0
        %959 = vmatprep.subr.mxu0 0.0
        %960 = vmatpush2.msra.mxu0 0.0
        %961 = vmatprep.subr.mxu0 0.0
        %962 = vmatpush2.msra.mxu0 0.0
        %963 = vmatprep.subr.mxu0 0.0
        %964 = vmatpush2.msra.mxu0 0.0
        %965 = vmatprep.subr.mxu0 0.0
        %966 = vmatpush2.msra.mxu0 0.0
        %967 = vmatprep.mubr.f32.mxu0 0.0
        %968 = vmatmul.mubr.f32.gmra.mxu0 %v901
        %v969 = vpop.f32.mrf.mxu0
        %v970 = vadd.f32 0.0, %v969
        %v971 = vpop.f32.mrf.mxu0
        %972 = vdwg.mxu0
        %v973 = vrcp.pop %v899
        %v974 = vmul.f32 %v970, %v973
        %975 = vst.msk [vmem:[#allocation4] sm:$0xff] %vm814, %v974
        %976 = vrot.lane.b32.xlu0 %v811, 120
        %v977 = vpop.permute.xlu0 %976
        %978 = vrot.lane.b32.xlu0 %v812, 120
        %v979 = vpop.permute.xlu0 %978
        %v980 = vsel %vm814, %v977, 0
        %v982 = vsel %vm814, %v979, 0
        %984 = vmatprep.subr.mxu0 0.0
        %985 = vmatpush1.xpose.msra.mxu0 0.0
        %986 = vmatprep.subr.mxu0 0.0
        %987 = vmatpush1.xpose.msra.mxu0 0.0
        %988 = vmatprep.subr.mxu0 0.0
        %989 = vmatpush1.xpose.msra.mxu0 0.0
        %990 = vmatprep.subr.mxu0 0.0
        %991 = vmatpush1.xpose.msra.mxu0 0.0
        %992 = vmatprep.subr.mxu0 0.0
        %993 = vmatpush1.xpose.msra.mxu0 0.0
        %994 = vmatprep.subr.mxu0 0.0
        %995 = vmatpush1.xpose.msra.mxu0 0.0
        %996 = vmatprep.subr.mxu0 0.0
        %997 = vmatpush1.xpose.msra.mxu0 0.0
        %998 = vmatprep.subr.mxu0 0.0
        %999 = vmatpush1.xpose.msra.mxu0 0.0
        %1000 = vmatprep.subr.mxu0 0.0
        %1001 = vmatpush1.xpose.msra.mxu0 0.0
        %1002 = vmatprep.subr.mxu0 0.0
        %1003 = vmatpush1.xpose.msra.mxu0 0.0
        %1004 = vmatprep.subr.mxu0 0.0
        %1005 = vmatpush1.xpose.msra.mxu0 0.0
        %1006 = vmatprep.subr.mxu0 0.0
        %1007 = vmatpush1.xpose.msra.mxu0 0.0
        %1008 = vmatprep.subr.mxu0 0.0
        %1009 = vmatpush1.xpose.msra.mxu0 0.0
        %1010 = vmatprep.subr.mxu0 0.0
        %1011 = vmatpush1.xpose.msra.mxu0 0.0
        %1012 = vmatprep.subr.mxu0 0.0
        %1013 = vmatpush1.xpose.msra.mxu0 0.0
        %1014 = vmatprep.subr.mxu0 0.0
        %1015 = vmatpush1.xpose.msra.mxu0 %v982
        %1016 = vmatprep.subr.mxu0 0.0
        %1017 = vmatpush2.xpose.msra.mxu0 0.0
        %1018 = vmatprep.subr.mxu0 0.0
        %1019 = vmatpush2.xpose.msra.mxu0 0.0
        %1020 = vmatprep.subr.mxu0 0.0
        %1021 = vmatpush2.xpose.msra.mxu0 0.0
        %1022 = vmatprep.subr.mxu0 0.0
        %1023 = vmatpush2.xpose.msra.mxu0 0.0
        %1024 = vmatprep.subr.mxu0 0.0
        %1025 = vmatpush2.xpose.msra.mxu0 0.0
        %1026 = vmatprep.subr.mxu0 0.0
        %1027 = vmatpush2.xpose.msra.mxu0 0.0
        %1028 = vmatprep.subr.mxu0 0.0
        %1029 = vmatpush2.xpose.msra.mxu0 0.0
        %1030 = vmatprep.subr.mxu0 0.0
        %1031 = vmatpush2.xpose.msra.mxu0 0.0
        %1032 = vmatprep.subr.mxu0 0.0
        %1033 = vmatpush2.xpose.msra.mxu0 0.0
        %1034 = vmatprep.subr.mxu0 0.0
        %1035 = vmatpush2.xpose.msra.mxu0 0.0
        %1036 = vmatprep.subr.mxu0 0.0
        %1037 = vmatpush2.xpose.msra.mxu0 0.0
        %1038 = vmatprep.subr.mxu0 0.0
        %1039 = vmatpush2.xpose.msra.mxu0 0.0
        %1040 = vmatprep.subr.mxu0 0.0
        %1041 = vmatpush2.xpose.msra.mxu0 0.0
        %1042 = vmatprep.subr.mxu0 0.0
        %1043 = vmatpush2.xpose.msra.mxu0 0.0
        %1044 = vmatprep.subr.mxu0 0.0
        %1045 = vmatpush2.xpose.msra.mxu0 0.0
        %1046 = vmatprep.subr.mxu0 0.0
        %1047 = vmatpush2.xpose.msra.mxu0 0.0
        %1048 = vmatprep.mubr.f32.mxu0 0.0
        %1049 = vmatmul.mubr.f32.gmra.mxu0 %v980
        %v1050 = vpop.f32.mrf.mxu0
        %v1051 = vadd.f32 0.0, %v1050
        %v1052 = vpop.f32.mrf.mxu0
        %1053 = vdwg.mxu0
        %v1054 = vsel %vm814, %v1051, -inf
        %1055 = vmax.xlane.f32.xlu0 %v1054
        %v1056 = vpop.xlane.xlu0 %1055
        %v1057 = vsub.f32 %v1051, %v1056
        %v1058 = vmul.f32 %v1057, 1.442695
        %v1059 = vpow.pop %v1058
        %v1060 = vsel %vm814, %v1059, 0.0
        %1061 = vadd.xlane.f32.xlu0 %v1060
        %v1062 = vpop.xlane.xlu0 %1061
        %1064 = vrot.lane.b32.xlu0 %v813, 120
        %v1065 = vpop.permute.xlu0 %1064
        %v1068 = vsel %vm814, %v1059, 0
        %1070 = vmatprep.subr.mxu0 0.0
        %1071 = vmatpush1.msra.mxu0 0.0
        %1072 = vmatprep.subr.mxu0 0.0
        %1073 = vmatpush1.msra.mxu0 0.0
        %1074 = vmatprep.subr.mxu0 0.0
        %1075 = vmatpush1.msra.mxu0 0.0
        %1076 = vmatprep.subr.mxu0 0.0
        %1077 = vmatpush1.msra.mxu0 0.0
        %1078 = vmatprep.subr.mxu0 0.0
        %1079 = vmatpush1.msra.mxu0 0.0
        %1080 = vmatprep.subr.mxu0 0.0
        %1081 = vmatpush1.msra.mxu0 0.0
        %1082 = vmatprep.subr.mxu0 0.0
        %1083 = vmatpush1.msra.mxu0 0.0
        %1084 = vmatprep.subr.mxu0 0.0
        %1085 = vmatpush1.msra.mxu0 0.0
        %1086 = vmatprep.subr.mxu0 0.0
        %1087 = vmatpush1.msra.mxu0 0.0
        %1088 = vmatprep.subr.mxu0 0.0
        %1089 = vmatpush1.msra.mxu0 0.0
        %1090 = vmatprep.subr.mxu0 0.0
        %1091 = vmatpush1.msra.mxu0 0.0
        %1092 = vmatprep.subr.mxu0 0.0
        %1093 = vmatpush1.msra.mxu0 0.0
        %1094 = vmatprep.subr.mxu0 0.0
        %1095 = vmatpush1.msra.mxu0 0.0
        %1096 = vmatprep.subr.mxu0 0.0
        %1097 = vmatpush1.msra.mxu0 0.0
        %1098 = vmatprep.subr.mxu0 0.0
        %1099 = vmatpush1.msra.mxu0 0.0
        %1100 = vmatprep.subr.mxu0 0.0
        %1101 = vmatpush1.msra.mxu0 %v1065
        %1102 = vmatprep.subr.mxu0 0.0
        %1103 = vmatpush2.msra.mxu0 0.0
        %1104 = vmatprep.subr.mxu0 0.0
        %1105 = vmatpush2.msra.mxu0 0.0
        %1106 = vmatprep.subr.mxu0 0.0
        %1107 = vmatpush2.msra.mxu0 0.0
        %1108 = vmatprep.subr.mxu0 0.0
        %1109 = vmatpush2.msra.mxu0 0.0
        %1110 = vmatprep.subr.mxu0 0.0
        %1111 = vmatpush2.msra.mxu0 0.0
        %1112 = vmatprep.subr.mxu0 0.0
        %1113 = vmatpush2.msra.mxu0 0.0
        %1114 = vmatprep.subr.mxu0 0.0
        %1115 = vmatpush2.msra.mxu0 0.0
        %1116 = vmatprep.subr.mxu0 0.0
        %1117 = vmatpush2.msra.mxu0 0.0
        %1118 = vmatprep.subr.mxu0 0.0
        %1119 = vmatpush2.msra.mxu0 0.0
        %1120 = vmatprep.subr.mxu0 0.0
        %1121 = vmatpush2.msra.mxu0 0.0
        %1122 = vmatprep.subr.mxu0 0.0
        %1123 = vmatpush2.msra.mxu0 0.0
        %1124 = vmatprep.subr.mxu0 0.0
        %1125 = vmatpush2.msra.mxu0 0.0
        %1126 = vmatprep.subr.mxu0 0.0
        %1127 = vmatpush2.msra.mxu0 0.0
        %1128 = vmatprep.subr.mxu0 0.0
        %1129 = vmatpush2.msra.mxu0 0.0
        %1130 = vmatprep.subr.mxu0 0.0
        %1131 = vmatpush2.msra.mxu0 0.0
        %1132 = vmatprep.subr.mxu0 0.0
        %1133 = vmatpush2.msra.mxu0 0.0
        %1134 = vmatprep.mubr.f32.mxu0 0.0
        %1135 = vmatmul.mubr.f32.gmra.mxu0 %v1068
        %v1136 = vpop.f32.mrf.mxu0
        %v1137 = vadd.f32 0.0, %v1136
        %v1138 = vpop.f32.mrf.mxu0
        %1139 = vdwg.mxu0
        %v1140 = vrcp.pop %v1062
        %v1141 = vmul.f32 %v1137, %v1140
        %1143 = vrot.lane.b32.xlu0 %v1141, 8
        %v1144 = vpop.permute.xlu0 %1143
        %vm1146 = vcmask 130112
        %1147 = vst.msk [vmem:[#allocation4] sm:$0xff] %vm1146, %v1144
        %1148 = vrot.lane.b32.xlu0 %v811, 112
        %v1149 = vpop.permute.xlu0 %1148
        %1150 = vrot.lane.b32.xlu0 %v812, 112
        %v1151 = vpop.permute.xlu0 %1150
        %v1152 = vsel %vm814, %v1149, 0
        %v1154 = vsel %vm814, %v1151, 0
        %1156 = vmatprep.subr.mxu0 0.0
        %1157 = vmatpush1.xpose.msra.mxu0 0.0
        %1158 = vmatprep.subr.mxu0 0.0
        %1159 = vmatpush1.xpose.msra.mxu0 0.0
        %1160 = vmatprep.subr.mxu0 0.0
        %1161 = vmatpush1.xpose.msra.mxu0 0.0
        %1162 = vmatprep.subr.mxu0 0.0
        %1163 = vmatpush1.xpose.msra.mxu0 0.0
        %1164 = vmatprep.subr.mxu0 0.0
        %1165 = vmatpush1.xpose.msra.mxu0 0.0
        %1166 = vmatprep.subr.mxu0 0.0
        %1167 = vmatpush1.xpose.msra.mxu0 0.0
        %1168 = vmatprep.subr.mxu0 0.0
        %1169 = vmatpush1.xpose.msra.mxu0 0.0
        %1170 = vmatprep.subr.mxu0 0.0
        %1171 = vmatpush1.xpose.msra.mxu0 0.0
        %1172 = vmatprep.subr.mxu0 0.0
        %1173 = vmatpush1.xpose.msra.mxu0 0.0
        %1174 = vmatprep.subr.mxu0 0.0
        %1175 = vmatpush1.xpose.msra.mxu0 0.0
        %1176 = vmatprep.subr.mxu0 0.0
        %1177 = vmatpush1.xpose.msra.mxu0 0.0
        %1178 = vmatprep.subr.mxu0 0.0
        %1179 = vmatpush1.xpose.msra.mxu0 0.0
        %1180 = vmatprep.subr.mxu0 0.0
        %1181 = vmatpush1.xpose.msra.mxu0 0.0
        %1182 = vmatprep.subr.mxu0 0.0
        %1183 = vmatpush1.xpose.msra.mxu0 0.0
        %1184 = vmatprep.subr.mxu0 0.0
        %1185 = vmatpush1.xpose.msra.mxu0 0.0
        %1186 = vmatprep.subr.mxu0 0.0
        %1187 = vmatpush1.xpose.msra.mxu0 %v1154
        %1188 = vmatprep.subr.mxu0 0.0
        %1189 = vmatpush2.xpose.msra.mxu0 0.0
        %1190 = vmatprep.subr.mxu0 0.0
        %1191 = vmatpush2.xpose.msra.mxu0 0.0
        %1192 = vmatprep.subr.mxu0 0.0
        %1193 = vmatpush2.xpose.msra.mxu0 0.0
        %1194 = vmatprep.subr.mxu0 0.0
        %1195 = vmatpush2.xpose.msra.mxu0 0.0
        %1196 = vmatprep.subr.mxu0 0.0
        %1197 = vmatpush2.xpose.msra.mxu0 0.0
        %1198 = vmatprep.subr.mxu0 0.0
        %1199 = vmatpush2.xpose.msra.mxu0 0.0
        %1200 = vmatprep.subr.mxu0 0.0
        %1201 = vmatpush2.xpose.msra.mxu0 0.0
        %1202 = vmatprep.subr.mxu0 0.0
        %1203 = vmatpush2.xpose.msra.mxu0 0.0
        %1204 = vmatprep.subr.mxu0 0.0
        %1205 = vmatpush2.xpose.msra.mxu0 0.0
        %1206 = vmatprep.subr.mxu0 0.0
        %1207 = vmatpush2.xpose.msra.mxu0 0.0
        %1208 = vmatprep.subr.mxu0 0.0
        %1209 = vmatpush2.xpose.msra.mxu0 0.0
        %1210 = vmatprep.subr.mxu0 0.0
        %1211 = vmatpush2.xpose.msra.mxu0 0.0
        %1212 = vmatprep.subr.mxu0 0.0
        %1213 = vmatpush2.xpose.msra.mxu0 0.0
        %1214 = vmatprep.subr.mxu0 0.0
        %1215 = vmatpush2.xpose.msra.mxu0 0.0
        %1216 = vmatprep.subr.mxu0 0.0
        %1217 = vmatpush2.xpose.msra.mxu0 0.0
        %1218 = vmatprep.subr.mxu0 0.0
        %1219 = vmatpush2.xpose.msra.mxu0 0.0
        %1220 = vmatprep.mubr.f32.mxu0 0.0
        %1221 = vmatmul.mubr.f32.gmra.mxu0 %v1152
        %v1222 = vpop.f32.mrf.mxu0
        %v1223 = vadd.f32 0.0, %v1222
        %v1224 = vpop.f32.mrf.mxu0
        %1225 = vdwg.mxu0
        %v1226 = vsel %vm814, %v1223, -inf
        %1227 = vmax.xlane.f32.xlu0 %v1226
        %v1228 = vpop.xlane.xlu0 %1227
        %v1229 = vsub.f32 %v1223, %v1228
        %v1230 = vmul.f32 %v1229, 1.442695
        %v1231 = vpow.pop %v1230
        %v1232 = vsel %vm814, %v1231, 0.0
        %1233 = vadd.xlane.f32.xlu0 %v1232
        %v1234 = vpop.xlane.xlu0 %1233
        %1235 = vrot.lane.b32.xlu0 %v813, 112
        %v1236 = vpop.permute.xlu0 %1235
        %v1239 = vsel %vm814, %v1231, 0
        %1241 = vmatprep.subr.mxu0 0.0
        %1242 = vmatpush1.msra.mxu0 0.0
        %1243 = vmatprep.subr.mxu0 0.0
        %1244 = vmatpush1.msra.mxu0 0.0
        %1245 = vmatprep.subr.mxu0 0.0
        %1246 = vmatpush1.msra.mxu0 0.0
        %1247 = vmatprep.subr.mxu0 0.0
        %1248 = vmatpush1.msra.mxu0 0.0
        %1249 = vmatprep.subr.mxu0 0.0
        %1250 = vmatpush1.msra.mxu0 0.0
        %1251 = vmatprep.subr.mxu0 0.0
        %1252 = vmatpush1.msra.mxu0 0.0
        %1253 = vmatprep.subr.mxu0 0.0
        %1254 = vmatpush1.msra.mxu0 0.0
        %1255 = vmatprep.subr.mxu0 0.0
        %1256 = vmatpush1.msra.mxu0 0.0
        %1257 = vmatprep.subr.mxu0 0.0
        %1258 = vmatpush1.msra.mxu0 0.0
        %1259 = vmatprep.subr.mxu0 0.0
        %1260 = vmatpush1.msra.mxu0 0.0
        %1261 = vmatprep.subr.mxu0 0.0
        %1262 = vmatpush1.msra.mxu0 0.0
        %1263 = vmatprep.subr.mxu0 0.0
        %1264 = vmatpush1.msra.mxu0 0.0
        %1265 = vmatprep.subr.mxu0 0.0
        %1266 = vmatpush1.msra.mxu0 0.0
        %1267 = vmatprep.subr.mxu0 0.0
        %1268 = vmatpush1.msra.mxu0 0.0
        %1269 = vmatprep.subr.mxu0 0.0
        %1270 = vmatpush1.msra.mxu0 0.0
        %1271 = vmatprep.subr.mxu0 0.0
        %1272 = vmatpush1.msra.mxu0 %v1236
        %1273 = vmatprep.subr.mxu0 0.0
        %1274 = vmatpush2.msra.mxu0 0.0
        %1275 = vmatprep.subr.mxu0 0.0
        %1276 = vmatpush2.msra.mxu0 0.0
        %1277 = vmatprep.subr.mxu0 0.0
        %1278 = vmatpush2.msra.mxu0 0.0
        %1279 = vmatprep.subr.mxu0 0.0
        %1280 = vmatpush2.msra.mxu0 0.0
        %1281 = vmatprep.subr.mxu0 0.0
        %1282 = vmatpush2.msra.mxu0 0.0
        %1283 = vmatprep.subr.mxu0 0.0
        %1284 = vmatpush2.msra.mxu0 0.0
        %1285 = vmatprep.subr.mxu0 0.0
        %1286 = vmatpush2.msra.mxu0 0.0
        %1287 = vmatprep.subr.mxu0 0.0
        %1288 = vmatpush2.msra.mxu0 0.0
        %1289 = vmatprep.subr.mxu0 0.0
        %1290 = vmatpush2.msra.mxu0 0.0
        %1291 = vmatprep.subr.mxu0 0.0
        %1292 = vmatpush2.msra.mxu0 0.0
        %1293 = vmatprep.subr.mxu0 0.0
        %1294 = vmatpush2.msra.mxu0 0.0
        %1295 = vmatprep.subr.mxu0 0.0
        %1296 = vmatpush2.msra.mxu0 0.0
        %1297 = vmatprep.subr.mxu0 0.0
        %1298 = vmatpush2.msra.mxu0 0.0
        %1299 = vmatprep.subr.mxu0 0.0
        %1300 = vmatpush2.msra.mxu0 0.0
        %1301 = vmatprep.subr.mxu0 0.0
        %1302 = vmatpush2.msra.mxu0 0.0
        %1303 = vmatprep.subr.mxu0 0.0
        %1304 = vmatpush2.msra.mxu0 0.0
        %1305 = vmatprep.mubr.f32.mxu0 0.0
        %1306 = vmatmul.mubr.f32.gmra.mxu0 %v1239
        %v1307 = vpop.f32.mrf.mxu0
        %v1308 = vadd.f32 0.0, %v1307
        %v1309 = vpop.f32.mrf.mxu0
        %1310 = vdwg.mxu0
        %v1311 = vrcp.pop %v1234
        %v1312 = vmul.f32 %v1308, %v1311
        %1314 = vrot.lane.b32.xlu0 %v1312, 16
        %v1315 = vpop.permute.xlu0 %1314
        %vm1317 = vcmask 195712
        %1318 = vst.msk [vmem:[#allocation4] sm:$0xff] %vm1317, %v1315
        %1319 = vrot.lane.b32.xlu0 %v811, 104
        %v1320 = vpop.permute.xlu0 %1319
        %1321 = vrot.lane.b32.xlu0 %v812, 104
        %v1322 = vpop.permute.xlu0 %1321
        %v1323 = vsel %vm814, %v1320, 0
        %v1325 = vsel %vm814, %v1322, 0
        %1327 = vmatprep.subr.mxu0 0.0
        %1328 = vmatpush1.xpose.msra.mxu0 0.0
        %1329 = vmatprep.subr.mxu0 0.0
        %1330 = vmatpush1.xpose.msra.mxu0 0.0
        %1331 = vmatprep.subr.mxu0 0.0
        %1332 = vmatpush1.xpose.msra.mxu0 0.0
        %1333 = vmatprep.subr.mxu0 0.0
        %1334 = vmatpush1.xpose.msra.mxu0 0.0
        %1335 = vmatprep.subr.mxu0 0.0
        %1336 = vmatpush1.xpose.msra.mxu0 0.0
        %1337 = vmatprep.subr.mxu0 0.0
        %1338 = vmatpush1.xpose.msra.mxu0 0.0
        %1339 = vmatprep.subr.mxu0 0.0
        %1340 = vmatpush1.xpose.msra.mxu0 0.0
        %1341 = vmatprep.subr.mxu0 0.0
        %1342 = vmatpush1.xpose.msra.mxu0 0.0
        %1343 = vmatprep.subr.mxu0 0.0
        %1344 = vmatpush1.xpose.msra.mxu0 0.0
        %1345 = vmatprep.subr.mxu0 0.0
        %1346 = vmatpush1.xpose.msra.mxu0 0.0
        %1347 = vmatprep.subr.mxu0 0.0
        %1348 = vmatpush1.xpose.msra.mxu0 0.0
        %1349 = vmatprep.subr.mxu0 0.0
        %1350 = vmatpush1.xpose.msra.mxu0 0.0
        %1351 = vmatprep.subr.mxu0 0.0
        %1352 = vmatpush1.xpose.msra.mxu0 0.0
        %1353 = vmatprep.subr.mxu0 0.0
        %1354 = vmatpush1.xpose.msra.mxu0 0.0
        %1355 = vmatprep.subr.mxu0 0.0
        %1356 = vmatpush1.xpose.msra.mxu0 0.0
        %1357 = vmatprep.subr.mxu0 0.0
        %1358 = vmatpush1.xpose.msra.mxu0 %v1325
        %1359 = vmatprep.subr.mxu0 0.0
        %1360 = vmatpush2.xpose.msra.mxu0 0.0
        %1361 = vmatprep.subr.mxu0 0.0
        %1362 = vmatpush2.xpose.msra.mxu0 0.0
        %1363 = vmatprep.subr.mxu0 0.0
        %1364 = vmatpush2.xpose.msra.mxu0 0.0
        %1365 = vmatprep.subr.mxu0 0.0
        %1366 = vmatpush2.xpose.msra.mxu0 0.0
        %1367 = vmatprep.subr.mxu0 0.0
        %1368 = vmatpush2.xpose.msra.mxu0 0.0
        %1369 = vmatprep.subr.mxu0 0.0
        %1370 = vmatpush2.xpose.msra.mxu0 0.0
        %1371 = vmatprep.subr.mxu0 0.0
        %1372 = vmatpush2.xpose.msra.mxu0 0.0
        %1373 = vmatprep.subr.mxu0 0.0
        %1374 = vmatpush2.xpose.msra.mxu0 0.0
        %1375 = vmatprep.subr.mxu0 0.0
        %1376 = vmatpush2.xpose.msra.mxu0 0.0
        %1377 = vmatprep.subr.mxu0 0.0
        %1378 = vmatpush2.xpose.msra.mxu0 0.0
        %1379 = vmatprep.subr.mxu0 0.0
        %1380 = vmatpush2.xpose.msra.mxu0 0.0
        %1381 = vmatprep.subr.mxu0 0.0
        %1382 = vmatpush2.xpose.msra.mxu0 0.0
        %1383 = vmatprep.subr.mxu0 0.0
        %1384 = vmatpush2.xpose.msra.mxu0 0.0
        %1385 = vmatprep.subr.mxu0 0.0
        %1386 = vmatpush2.xpose.msra.mxu0 0.0
        %1387 = vmatprep.subr.mxu0 0.0
        %1388 = vmatpush2.xpose.msra.mxu0 0.0
        %1389 = vmatprep.subr.mxu0 0.0
        %1390 = vmatpush2.xpose.msra.mxu0 0.0
        %1391 = vmatprep.mubr.f32.mxu0 0.0
        %1392 = vmatmul.mubr.f32.gmra.mxu0 %v1323
        %v1393 = vpop.f32.mrf.mxu0
        %v1394 = vadd.f32 0.0, %v1393
        %v1395 = vpop.f32.mrf.mxu0
        %1396 = vdwg.mxu0
        %v1397 = vsel %vm814, %v1394, -inf
        %1398 = vmax.xlane.f32.xlu0 %v1397
        %v1399 = vpop.xlane.xlu0 %1398
        %v1400 = vsub.f32 %v1394, %v1399
        %v1401 = vmul.f32 %v1400, 1.442695
        %v1402 = vpow.pop %v1401
        %v1403 = vsel %vm814, %v1402, 0.0
        %1404 = vadd.xlane.f32.xlu0 %v1403
        %v1405 = vpop.xlane.xlu0 %1404
        %1406 = vrot.lane.b32.xlu0 %v813, 104
        %v1407 = vpop.permute.xlu0 %1406
        %v1410 = vsel %vm814, %v1402, 0
        %1412 = vmatprep.subr.mxu0 0.0
        %1413 = vmatpush1.msra.mxu0 0.0
        %1414 = vmatprep.subr.mxu0 0.0
        %1415 = vmatpush1.msra.mxu0 0.0
        %1416 = vmatprep.subr.mxu0 0.0
        %1417 = vmatpush1.msra.mxu0 0.0
        %1418 = vmatprep.subr.mxu0 0.0
        %1419 = vmatpush1.msra.mxu0 0.0
        %1420 = vmatprep.subr.mxu0 0.0
        %1421 = vmatpush1.msra.mxu0 0.0
        %1422 = vmatprep.subr.mxu0 0.0
        %1423 = vmatpush1.msra.mxu0 0.0
        %1424 = vmatprep.subr.mxu0 0.0
        %1425 = vmatpush1.msra.mxu0 0.0
        %1426 = vmatprep.subr.mxu0 0.0
        %1427 = vmatpush1.msra.mxu0 0.0
        %1428 = vmatprep.subr.mxu0 0.0
        %1429 = vmatpush1.msra.mxu0 0.0
        %1430 = vmatprep.subr.mxu0 0.0
        %1431 = vmatpush1.msra.mxu0 0.0
        %1432 = vmatprep.subr.mxu0 0.0
        %1433 = vmatpush1.msra.mxu0 0.0
        %1434 = vmatprep.subr.mxu0 0.0
        %1435 = vmatpush1.msra.mxu0 0.0
        %1436 = vmatprep.subr.mxu0 0.0
        %1437 = vmatpush1.msra.mxu0 0.0
        %1438 = vmatprep.subr.mxu0 0.0
        %1439 = vmatpush1.msra.mxu0 0.0
        %1440 = vmatprep.subr.mxu0 0.0
        %1441 = vmatpush1.msra.mxu0 0.0
        %1442 = vmatprep.subr.mxu0 0.0
        %1443 = vmatpush1.msra.mxu0 %v1407
        %1444 = vmatprep.subr.mxu0 0.0
        %1445 = vmatpush2.msra.mxu0 0.0
        %1446 = vmatprep.subr.mxu0 0.0
        %1447 = vmatpush2.msra.mxu0 0.0
        %1448 = vmatprep.subr.mxu0 0.0
        %1449 = vmatpush2.msra.mxu0 0.0
        %1450 = vmatprep.subr.mxu0 0.0
        %1451 = vmatpush2.msra.mxu0 0.0
        %1452 = vmatprep.subr.mxu0 0.0
        %1453 = vmatpush2.msra.mxu0 0.0
        %1454 = vmatprep.subr.mxu0 0.0
        %1455 = vmatpush2.msra.mxu0 0.0
        %1456 = vmatprep.subr.mxu0 0.0
        %1457 = vmatpush2.msra.mxu0 0.0
        %1458 = vmatprep.subr.mxu0 0.0
        %1459 = vmatpush2.msra.mxu0 0.0
        %1460 = vmatprep.subr.mxu0 0.0
        %1461 = vmatpush2.msra.mxu0 0.0
        %1462 = vmatprep.subr.mxu0 0.0
        %1463 = vmatpush2.msra.mxu0 0.0
        %1464 = vmatprep.subr.mxu0 0.0
        %1465 = vmatpush2.msra.mxu0 0.0
        %1466 = vmatprep.subr.mxu0 0.0
        %1467 = vmatpush2.msra.mxu0 0.0
        %1468 = vmatprep.subr.mxu0 0.0
        %1469 = vmatpush2.msra.mxu0 0.0
        %1470 = vmatprep.subr.mxu0 0.0
        %1471 = vmatpush2.msra.mxu0 0.0
        %1472 = vmatprep.subr.mxu0 0.0
        %1473 = vmatpush2.msra.mxu0 0.0
        %1474 = vmatprep.subr.mxu0 0.0
        %1475 = vmatpush2.msra.mxu0 0.0
        %1476 = vmatprep.mubr.f32.mxu0 0.0
        %1477 = vmatmul.mubr.f32.gmra.mxu0 %v1410
        %v1478 = vpop.f32.mrf.mxu0
        %v1479 = vadd.f32 0.0, %v1478
        %v1480 = vpop.f32.mrf.mxu0
        %1481 = vdwg.mxu0
        %v1482 = vrcp.pop %v1405
        %v1483 = vmul.f32 %v1479, %v1482
        %1485 = vrot.lane.b32.xlu0 %v1483, 24
        %v1486 = vpop.permute.xlu0 %1485
        %vm1488 = vcmask 261312
        %1489 = vst.msk [vmem:[#allocation4] sm:$0xff] %vm1488, %v1486
        %v1490 = vld [vmem:[#allocation4] sm:$0xff]
        %v1491 = vld [vmem:[#allocation16] sm:$0xff]
        %v1492 = vld [vmem:[#allocation16 + $0x8] sm:$0xff]
        %v1493 = vld [vmem:[#allocation16 + $0x10] sm:$0xff]
        %v1494 = vld [vmem:[#allocation16 + $0x18] sm:$0xff]
        %v1495 = vld [vmem:[%s10] sm:$0x1]
        %v1497 = vlaneseq
        %v1498 = vshrl.u32 %v1497, 7
        %v1499 = vsub.s32 0, %v1498
        %v1500 = vrot.slane %v1495, %v1499
        %v1503 = vsel %vm737, %v1490, 0
        %1505 = vmatprep.subr.mxu0 0.0
        %1506 = vmatpush1.msra.mxu0 0.0
        %1507 = vmatprep.subr.mxu0 0.0
        %1508 = vmatpush1.msra.mxu0 0.0
        %1509 = vmatprep.subr.mxu0 0.0
        %1510 = vmatpush1.msra.mxu0 0.0
        %1511 = vmatprep.subr.mxu0 0.0
        %1512 = vmatpush1.msra.mxu0 0.0
        %1513 = vmatprep.subr.mxu0 0.0
        %1514 = vmatpush1.msra.mxu0 0.0
        %1515 = vmatprep.subr.mxu0 0.0
        %1516 = vmatpush1.msra.mxu0 0.0
        %1517 = vmatprep.subr.mxu0 0.0
        %1518 = vmatpush1.msra.mxu0 0.0
        %1519 = vmatprep.subr.mxu0 0.0
        %1520 = vmatpush1.msra.mxu0 0.0
        %1521 = vmatprep.subr.mxu0 0.0
        %1522 = vmatpush1.msra.mxu0 0.0
        %1523 = vmatprep.subr.mxu0 0.0
        %1524 = vmatpush1.msra.mxu0 0.0
        %1525 = vmatprep.subr.mxu0 0.0
        %1526 = vmatpush1.msra.mxu0 0.0
        %1527 = vmatprep.subr.mxu0 0.0
        %1528 = vmatpush1.msra.mxu0 0.0
        %1529 = vmatprep.subr.mxu0 0.0
        %1530 = vmatpush1.msra.mxu0 %v1494
        %1531 = vmatprep.subr.mxu0 0.0
        %1532 = vmatpush1.msra.mxu0 %v1493
        %1533 = vmatprep.subr.mxu0 0.0
        %1534 = vmatpush1.msra.mxu0 %v1492
        %1535 = vmatprep.subr.mxu0 0.0
        %1536 = vmatpush1.msra.mxu0 %v1491
        %1537 = vmatprep.subr.mxu0 0.0
        %1538 = vmatpush2.msra.mxu0 0.0
        %1539 = vmatprep.subr.mxu0 0.0
        %1540 = vmatpush2.msra.mxu0 0.0
        %1541 = vmatprep.subr.mxu0 0.0
        %1542 = vmatpush2.msra.mxu0 0.0
        %1543 = vmatprep.subr.mxu0 0.0
        %1544 = vmatpush2.msra.mxu0 0.0
        %1545 = vmatprep.subr.mxu0 0.0
        %1546 = vmatpush2.msra.mxu0 0.0
        %1547 = vmatprep.subr.mxu0 0.0
        %1548 = vmatpush2.msra.mxu0 0.0
        %1549 = vmatprep.subr.mxu0 0.0
        %1550 = vmatpush2.msra.mxu0 0.0
        %1551 = vmatprep.subr.mxu0 0.0
        %1552 = vmatpush2.msra.mxu0 0.0
        %1553 = vmatprep.subr.mxu0 0.0
        %1554 = vmatpush2.msra.mxu0 0.0
        %1555 = vmatprep.subr.mxu0 0.0
        %1556 = vmatpush2.msra.mxu0 0.0
        %1557 = vmatprep.subr.mxu0 0.0
        %1558 = vmatpush2.msra.mxu0 0.0
        %1559 = vmatprep.subr.mxu0 0.0
        %1560 = vmatpush2.msra.mxu0 0.0
        %1561 = vmatprep.subr.mxu0 0.0
        %1562 = vmatpush2.msra.mxu0 0.0
        %1563 = vmatprep.subr.mxu0 0.0
        %1564 = vmatpush2.msra.mxu0 0.0
        %1565 = vmatprep.subr.mxu0 0.0
        %1566 = vmatpush2.msra.mxu0 0.0
        %1567 = vmatprep.subr.mxu0 0.0
        %1568 = vmatpush2.msra.mxu0 0.0
        %1569 = vmatprep.mubr.f32.mxu0 0.0
        %1570 = vmatmul.mubr.f32.gmra.mxu0 %v1503
        %v1571 = vpop.f32.mrf.mxu0
        %v1572 = vadd.f32 %v1500, %v1571
        %v1573 = vpop.f32.mrf.mxu0
        %1574 = vdwg.mxu0
        %1575 = vst.msk [vmem:[%s547] sm:$0xff] %vm737, %v1572
        %s1576 = sand.u32 %s303, 1
        %s1577 = scalar_lea.sflag [#allocation7], %s1576
        %s1578 = sand.u32 %s303, 1
        %s1579 = smul.addr %s1578, 8
        %s1580 = scalar_lea.vmem [#allocation17], %s1579
        // Predicated region
        $region97: #{tpu_custom_call.1} parent=63 // pred_check
          %p1581 = pneg %p313
        $region98: #{tpu_custom_call.1} parent=63 // pred_check_branch
          %1583 = sbr.rel (%p1581) target = $region100
        $region99: #{tpu_custom_call.1} parent=63 // pred_region
          %s1585 = ssub.s32 128, 128
          %1586 = vsyncadd %s1577, %s1585
          %s1587 = sadd.s32 %s38, %s37
          %s1588 = smul.addr %s1587, 128
          %s1589 = scalar_lea.hbm %s11, %s1588
          %s1591 = sshll.u32 %s1580, 4
          %s1592 = int_to_ptr.vmem [resolvable:$true] %s1591
          %1594 = dma.vmem_to_hbm [thread:$0]  %s1592, 128, %s1589, %s1577
        $region100: #{tpu_custom_call.1} parent=63 // pred_fallthru
          _
      $region64: #{tpu_custom_call.1} parent=5 // pred_fallthru
        _
      %p1595 = scmp.le.s32.totalorder 2, %s28
      // Predicated region
      $region101: #{tpu_custom_call.1} parent=5 // pred_check
        %p1596 = pneg %p1595
      $region102: #{tpu_custom_call.1} parent=5 // pred_check_branch
        %1598 = sbr.rel (%p1596) target = $region104
      $region103: #{tpu_custom_call.1} parent=5 // pred_region
        %s1599 = ssub.s32 %s28, 2
        // Predicated region
        $region105: #{tpu_custom_call.1} parent=103 // pred_check
          %p1600 = pneg %p319
        $region106: #{tpu_custom_call.1} parent=103 // pred_check_branch
          %1602 = sbr.rel (%p1600) target = $region108
        $region107: #{tpu_custom_call.1} parent=103 // pred_region
          %s1603 = sand.u32 %s304, 1
          %s1604 = scalar_lea.sflag [#allocation7], %s1603
          %s1605 = sand.u32 %s304, 1
          %s1606 = smul.addr %s1605, 8
          %s1607 = scalar_lea.vmem [#allocation17], %s1606
          %1608 = dma.done %s1604, 128
        $region108: #{tpu_custom_call.1} parent=103 // pred_fallthru
          _
      $region104: #{tpu_custom_call.1} parent=5 // pred_fallthru
        _
    $region6: #{tpu_custom_call.1} parent=1 // loop_footer
      %s32 = sadd.s32 1, %s28
    $region7: #{tpu_custom_call.1} parent=1 // loop_footer_branch
      %27 = sbr.rel target = $region3
    $region8: #{tpu_custom_call.1} parent=1 // loop_exit
      _
    %1609 = vsyncpa [#allocation6], 1
    %s1610 = scalar_lea.sflag [#allocation6], 1
    %1611 = vsyncpa %s1610, 1
    %1612 = vsyncpa [#allocation9], 1
    %s1613 = scalar_lea.sflag [#allocation9], 1
    %1614 = vsyncpa %s1613, 1
    %1615 = vsyncpa [#allocation12], 1
    %1616 = vsyncpa [#allocation15], 1
    %1617 = vsyncpa [#allocation7], 1
    %s1618 = scalar_lea.sflag [#allocation7], 1
    %1619 = vsyncpa %s1618, 1

</llo_original>
